<compile_context>
chip_gen: v6e
topology: v6e:2x2x1
jax: 0.10.0
libtpu: 0.0.40
codegen_flags: <defaults>
</compile_context>

<pallas_src>
import functools

import numpy as np
import jax
import jax.numpy as jnp
from jax.experimental import pallas as pl
from jax.experimental.pallas import tpu as pltpu

# ----------------------------- config (small, consistent with the module) ------------------
N_EMBED = 64          # codebook size (module default 1024; small synthetic value)
N_PARTS = 2
QUANT_DIM = 16        # == encoder(torch.zeros(1,3,32,32)).shape[1] for the encoder below
COMMITMENT = 1.0
DECAY = 0.8           # TODO(synk): EMA codebook update (decay) is training-only; not in forward.

_VMEM = pl.BlockSpec(memory_space=pltpu.MemorySpace.VMEM)


# ----------------------------- Pallas kernels ----------------------------------------------
def _matmul_bias_T_kernel(cols_ref, w_ref, b_ref, o_ref, *, apply_relu):
    # cols: (K, tile_n) bf16, w: (Cout, K) bf16, b: (Cout, 1) f32 -> o: (Cout, tile_n) f32
    y = jnp.dot(w_ref[...], cols_ref[...], preferred_element_type=jnp.float32)
    y = y + b_ref[...]
    if apply_relu:
        y = jnp.maximum(y, 0.0)
    o_ref[...] = y


def pallas_matmul_bias_T(cols, w2, b, apply_relu, tile_n=512):
    # Output is (Cout, N): the token axis N (multiple of 128) is the lane axis -> dense stores.
    K, N = cols.shape
    Cout = w2.shape[0]
    tile_n = min(tile_n, N)
    assert N % tile_n == 0 and tile_n % 128 == 0
    return pl.pallas_call(
        functools.partial(_matmul_bias_T_kernel, apply_relu=apply_relu),
        out_shape=jax.ShapeDtypeStruct((Cout, N), jnp.float32),
        grid=(N // tile_n,),
        in_specs=[pl.BlockSpec((K, tile_n), lambda i: (0, i)),
                  pl.BlockSpec((Cout, K), lambda i: (0, 0)),
                  pl.BlockSpec((Cout, 1), lambda i: (0, 0))],
        out_specs=pl.BlockSpec((Cout, tile_n), lambda i: (0, i)),
        compiler_params=pltpu.CompilerParams(dimension_semantics=("parallel",)),
    )(cols.astype(jnp.bfloat16), w2.astype(jnp.bfloat16),
      b.reshape(Cout, 1).astype(jnp.float32))


def _dwpw_kernel(p_ref, dwk_ref, dwb_ref, pww_ref, pwb_ref, o_ref):
    # Fused depthwise-3x3 + ReLU + pointwise-1x1.
    # p: (9, C, N) taps (N on lanes), dwk: (9, C, 1), dwb: (C, 1),
    # pww: (Cout, C) bf16, pwb: (Cout, 1) -> o: (Cout, N) f32 (lane-dense)
    acc = p_ref[0] * dwk_ref[0]
    for k in range(1, 9):
        acc = acc + p_ref[k] * dwk_ref[k]
    h = jnp.maximum(acc + dwb_ref[...], 0.0)                       # depthwise + ReLU (f32 VPU)
    y = jnp.dot(pww_ref[...], h.astype(jnp.bfloat16),
                preferred_element_type=jnp.float32)                # pointwise 1x1 on MXU
    o_ref[...] = y + pwb_ref[...]


def pallas_dwpw(p, dwk, dwb, pww, pwb):
    _, C, N = p.shape
    Cout = pww.shape[0]
    return pl.pallas_call(
        _dwpw_kernel,
        out_shape=jax.ShapeDtypeStruct((Cout, N), jnp.float32),
        in_specs=[_VMEM, _VMEM, _VMEM, _VMEM, _VMEM],
        out_specs=_VMEM,
    )(p, dwk, dwb, pww, pwb)


def _vq_kernel(xT_ref, cb_ref, qT_ref, idx_ref, err_ref, *, err_scale):
    # xT: (D, N) tokens transposed (N on lanes), cb: (E, D) codebook.
    xT = xT_ref[...]
    cb = cb_ref[...]
    E = cb.shape[0]
    N = xT.shape[1]
    # squared-distance argmin; ||x||^2 dropped (constant over the codebook axis)
    dots = jnp.dot(cb, xT, preferred_element_type=jnp.float32)      # (E, N)
    cb_sq = jnp.sum(cb * cb, axis=1, keepdims=True)                 # (E, 1)
    dist = cb_sq - 2.0 * dots                                       # VPU broadcast, no ones-matmul
    min_d = jnp.min(dist, axis=0, keepdims=True)                    # (1, N)
    code_iota = jax.lax.broadcasted_iota(jnp.int32, (E, N), 0)
    idx = jnp.min(jnp.where(dist <= min_d, code_iota, E),
                  axis=0, keepdims=True)                            # first argmin, (1, N)
    idx_ref[...] = idx.astype(jnp.int32)
    # gather codebook rows via one-hot matmul (MXU); output already lane-dense (D, N)
    onehot = (code_iota == idx).astype(jnp.float32)                 # (E, N)
    qT = jax.lax.dot_general(cb, onehot, (((0,), (0,)), ((), ())),
                             preferred_element_type=jnp.float32)    # (D, N)
    qT_ref[...] = qT
    # commitment loss: sum over parts of F.mse_loss(q, x) * commitment, scaled in-kernel
    d = qT - xT
    se = jnp.sum(d * d, axis=1, keepdims=True)                      # (D, 1)
    err_ref[...] = jnp.sum(se, axis=0, keepdims=True) * err_scale   # (1, 1)


def pallas_vq(xT, codebook, commitment, n_parts):
    D, N = xT.shape
    err_scale = float(commitment) * float(n_parts) / float(N * D)   # 1/(elements per part)
    return pl.pallas_call(
        functools.partial(_vq_kernel, err_scale=err_scale),
        out_shape=(jax.ShapeDtypeStruct((D, N), jnp.float32),
                   jax.ShapeDtypeStruct((1, N), jnp.int32),
                   jax.ShapeDtypeStruct((1, 1), jnp.float32)),
        in_specs=[_VMEM, _VMEM],
        out_specs=(_VMEM, _VMEM, _VMEM),
    )(xT, codebook)


# ----------------------------- conv glue (channel-major token layout) ----------------------
# Activations are (C, B, H, W); tokens are (C, B*H*W) so the token axis sits on lanes.
def _im2col_3x3_cm(x, stride):
    C, B, H, W = x.shape
    xp = jnp.pad(x, ((0, 0), (0, 0), (1, 1), (1, 1)))
    Ho = (H + 2 - 3) // stride + 1
    Wo = (W + 2 - 3) // stride + 1
    taps = []
    for i in range(3):
        for j in range(3):
            taps.append(xp[:, :, i:i + stride * (Ho - 1) + 1:stride,
                               j:j + stride * (Wo - 1) + 1:stride])     # (C, B, Ho, Wo)
    return taps, Ho, Wo


def conv3x3_cm(x, w, b, stride, relu):
    # x: (C, B, H, W); w: (Cout, Cin, 3, 3) torch OIHW
    C, B = x.shape[0], x.shape[1]
    taps, Ho, Wo = _im2col_3x3_cm(x, stride)
    cols = jnp.stack(taps, axis=1).reshape(C * 9, B * Ho * Wo)          # K index = c*9 + i*3 + j
    Cout = w.shape[0]
    y = pallas_matmul_bias_T(cols, w.reshape(Cout, C * 9), b, relu)     # (Cout, N)
    return y.reshape(Cout, B, Ho, Wo)


def up2_conv3x3_cm(x, w, b, relu):
    # Fused: nearest-neighbour 2x upsample + conv3x3(stride=1, pad=1).
    # Taps are gathered directly from the padded pre-upsample image (static indices);
    # the 4x-larger upsampled activation is never materialized.
    C, B, H, W = x.shape
    Ho, Wo = 2 * H, 2 * W
    xp = jnp.pad(x, ((0, 0), (0, 0), (1, 1), (1, 1)))                   # (C, B, H+2, W+2)
    taps = []
    for i in range(3):
        hidx = ((np.arange(Ho) + i - 1) // 2 + 1).astype(np.int32)      # index into padded small
        for j in range(3):
            widx = ((np.arange(Wo) + j - 1) // 2 + 1).astype(np.int32)
            t = jnp.take(jnp.take(xp, hidx, axis=2), widx, axis=3)      # (C, B, Ho, Wo)
            taps.append(t)
    cols = jnp.stack(taps, axis=1).reshape(C * 9, B * Ho * Wo)
    Cout = w.shape[0]
    y = pallas_matmul_bias_T(cols, w.reshape(Cout, C * 9), b, relu)
    return y.reshape(Cout, B, Ho, Wo)


def dwpw_cm(x, dw_w, dw_b, pw_w, pw_b, stride):
    # Fused depthwise 3x3 (+ReLU) and pointwise 1x1. x: (C, B, H, W).
    C, B = x.shape[0], x.shape[1]
    taps, Ho, Wo = _im2col_3x3_cm(x, stride)
    p = jnp.stack(taps, axis=0).reshape(9, C, B * Ho * Wo)              # (9, C, N): N on lanes
    dwk = dw_w.reshape(C, 9).T.reshape(9, C, 1)
    Cout = pw_w.shape[0]
    y = pallas_dwpw(p, dwk, dw_b.reshape(C, 1),
                    pw_w.reshape(Cout, C).astype(jnp.bfloat16),
                    pw_b.reshape(Cout, 1))
    return y.reshape(Cout, B, Ho, Wo)


# ----------------------------- encoder / decoder (synthetic MobileNet-style) ---------------
# TODO(synk): PyTorch gets encoder/decoder from the `encdec` dict; they are synthesized here.
def encoder_fwd(x_cm, p):
    x = conv3x3_cm(x_cm, p['enc_w1'], p['enc_b1'], stride=2, relu=True)   # (16, B, 16, 16)
    x = dwpw_cm(x, p['enc_dw_w'], p['enc_dw_b'],
                p['enc_pw_w'], p['enc_pw_b'], stride=2)                   # (16, B, 8, 8)
    return x


def decoder_fwd(x_cm, p):
    x = up2_conv3x3_cm(x_cm, p['dec_w1'], p['dec_b1'], relu=True)         # (16, B, 16, 16)
    x = up2_conv3x3_cm(x, p['dec_w2'], p['dec_b2'], relu=False)           # (3,  B, 32, 32)
    return x


# ----------------------------- quantize (matches MobileNet100.quantize) --------------------
def quantize(z_view, codebook, n_parts, commitment):
    # z_view: (B, H, W, Cq) -- the torch .view of the NCHW encoder output.
    # Both parts share the codebook, so all tokens are quantized in ONE Pallas call; the
    # interleaved (part-last) flat layout makes concat/stack along dim=3 a pure reshape.
    B, H, W, Cq = z_view.shape
    d = Cq // n_parts
    x_T = z_view.reshape(-1, d).T                                   # (d, B*H*W*n_parts)
    q_T, idx, err = pallas_vq(x_T, codebook, commitment, n_parts)
    z_q = q_T.T.reshape(B, H, W, Cq)                                # == torch.cat(parts, dim=3)
    indices = idx.reshape(B, H, W, n_parts)                         # == torch.stack(idx, dim=3)
    commit = err[0, 0]                                              # sum of per-part mse * weight
    return z_q, indices, commit


# ----------------------------- full forward -------------------------------------------------
@jax.jit
def mobilenet100_forward(x, params):
    # encoder runs in channel-major (C, B, H, W) layout (tokens on lanes)
    z_cm = encoder_fwd(x.transpose(1, 0, 2, 3), params)       # (16, B, 8, 8)
    z_nchw = z_cm.transpose(1, 0, 2, 3)                       # NCHW, as the torch encoder emits
    B, C, H, W = z_nchw.shape
    z_view = z_nchw.reshape(B, H, W, C)                       # torch .view -> flat reshape (NOT permute)
    z_q, indices, commit = quantize(z_view, params['codebook'], N_PARTS, COMMITMENT)
    zq_nchw = z_q.reshape(B, C, H, W)                         # torch .view back -> flat reshape
    out_cm = decoder_fwd(zq_nchw.transpose(1, 0, 2, 3), params)
    out = out_cm.transpose(1, 0, 2, 3)                        # back to NCHW
    return out, commit


# ----------------------------- deterministic parameter init --------------------------------
def init_params(key):
    ks = jax.random.split(key, 6)

    def w(k, shape, scale):
        return (scale * jax.random.normal(k, shape, jnp.float32)).astype(jnp.float32)

    return {
        'enc_w1':  w(ks[0], (16, 3, 3, 3), 0.2),  'enc_b1':  jnp.zeros((16,), jnp.float32),
        'enc_dw_w': w(ks[1], (16, 1, 3, 3), 0.2), 'enc_dw_b': jnp.zeros((16,), jnp.float32),
        'enc_pw_w': w(ks[2], (16, 16, 1, 1), 0.2), 'enc_pw_b': jnp.zeros((16,), jnp.float32),
        'dec_w1':  w(ks[3], (16, 16, 3, 3), 0.2), 'dec_b1':  jnp.zeros((16,), jnp.float32),
        'dec_w2':  w(ks[4], (3, 16, 3, 3), 0.2),  'dec_b2':  jnp.zeros((3,), jnp.float32),
        'codebook': w(ks[5], (N_EMBED, QUANT_DIM // N_PARTS), 0.5),
    }


if __name__ == "__main__":
    key = jax.random.PRNGKey(0)
    kx, kp = jax.random.split(key)
    x = jax.random.normal(kx, (2, 3, 32, 32), jnp.float32)   # NCHW, like torch
    params = init_params(kp)

    out, commit_loss = mobilenet100_forward(x, params)
    jax.block_until_ready((out, commit_loss))

    assert out.shape == (2, 3, 32, 32) and out.dtype == jnp.float32
    assert commit_loss.shape == () and commit_loss.dtype == jnp.float32
    print("KERNEL_OK")
</pallas_src>

<mosaic_0001>
module attributes {stable_mosaic.version = 11 : i64} {
  func.func @_matmul_bias_T_kernel(%arg0: i32, %arg1: memref<27x512xbf16, #tpu.memory_space<vmem>>, %arg2: memref<16x27xbf16, #tpu.memory_space<vmem>>, %arg3: memref<16x1xf32, #tpu.memory_space<vmem>>, %arg4: memref<16x512xf32, #tpu.memory_space<vmem>>) attributes {dimension_semantics = [#tpu.dimension_semantics<parallel>], iteration_bounds = array<i64: 1>, scalar_prefetch = 0 : i64, scratch_operands = 0 : i64, tpu.core_type = #tpu.core_type<tc>, window_params = [{transform_indices = @transform_0, window_bounds = array<i64: 27, 512>}, {pipeline_mode = #tpu.pipeline_mode<synchronous>, transform_indices = @transform_1, window_bounds = array<i64: 16, 27>}, {pipeline_mode = #tpu.pipeline_mode<synchronous>, transform_indices = @transform_2, window_bounds = array<i64: 16, 1>}, {transform_indices = @transform_3, window_bounds = array<i64: 16, 512>}]} {
    %c0 = arith.constant 0 : index
    %c0_0 = arith.constant 0 : index
    %0 = vector.load %arg2[%c0, %c0_0] : memref<16x27xbf16, #tpu.memory_space<vmem>>, vector<16x27xbf16>
    %c0_1 = arith.constant 0 : index
    %c0_2 = arith.constant 0 : index
    %1 = vector.load %arg1[%c0_1, %c0_2] : memref<27x512xbf16, #tpu.memory_space<vmem>>, vector<27x512xbf16>
    %cst = arith.constant dense<0.000000e+00> : vector<16x512xf32>
    %2 = tpu.matmul %0, %1, %cst {dimension_numbers = #tpu.dot_dimension_numbers<[1], [0], [0], [1], [0, 0, 1, 1], [], []>} : vector<16x27xbf16>, vector<27x512xbf16>, vector<16x512xf32> -> vector<16x512xf32>
    %c0_3 = arith.constant 0 : index
    %c0_4 = arith.constant 0 : index
    %3 = vector.load %arg3[%c0_3, %c0_4] : memref<16x1xf32, #tpu.memory_space<vmem>>, vector<16x1xf32>
    %4 = vector.broadcast %3 : vector<16x1xf32> to vector<16x512xf32>
    %5 = arith.addf %2, %4 : vector<16x512xf32>
    %cst_5 = arith.constant 0.000000e+00 : f32
    %6 = vector.broadcast %cst_5 : f32 to vector<16x512xf32>
    %7 = arith.maximumf %5, %6 : vector<16x512xf32>
    %c0_6 = arith.constant 0 : index
    %c0_7 = arith.constant 0 : index
    %8 = vector.load %arg4[%c0_6, %c0_7] : memref<16x512xf32, #tpu.memory_space<vmem>>, vector<16x512xf32>
    tpu.vector_store %arg4[%c0_6, %c0_7], %7 {strides = array<i32>} : memref<16x512xf32, #tpu.memory_space<vmem>>, vector<16x512xf32>,
    return
  }
  func.func @transform_0(%arg0: i32) -> (i32, i32) {
    %c0_i32 = arith.constant 0 : i32
    %c0_i32_0 = arith.constant 0 : i32
    return %c0_i32, %arg0 : i32, i32
  }
  func.func @transform_1(%arg0: i32) -> (i32, i32) {
    %c0_i32 = arith.constant 0 : i32
    %c0_i32_0 = arith.constant 0 : i32
    %c0_i32_1 = arith.constant 0 : i32
    return %c0_i32, %c0_i32_0 : i32, i32
  }
  func.func @transform_2(%arg0: i32) -> (i32, i32) {
    %c0_i32 = arith.constant 0 : i32
    %c0_i32_0 = arith.constant 0 : i32
    %c0_i32_1 = arith.constant 0 : i32
    return %c0_i32, %c0_i32_0 : i32, i32
  }
  func.func @transform_3(%arg0: i32) -> (i32, i32) {
    %c0_i32 = arith.constant 0 : i32
    %c0_i32_0 = arith.constant 0 : i32
    return %c0_i32, %arg0 : i32, i32
  }
}

module attributes {stable_mosaic.version = 11 : i64} {
  func.func @_dwpw_kernel(%arg0: memref<9x16x128xf32, #tpu.memory_space<vmem>>, %arg1: memref<9x16x1xf32, #tpu.memory_space<vmem>>, %arg2: memref<16x1xf32, #tpu.memory_space<vmem>>, %arg3: memref<16x16xbf16, #tpu.memory_space<vmem>>, %arg4: memref<16x1xf32, #tpu.memory_space<vmem>>, %arg5: memref<16x128xf32, #tpu.memory_space<vmem>>) attributes {dimension_semantics = [], scalar_prefetch = 0 : i64, scratch_operands = 0 : i64, tpu.core_type = #tpu.core_type<tc>} {
    %c0 = arith.constant 0 : index
    %c0_0 = arith.constant 0 : index
    %c0_1 = arith.constant 0 : index
    %0 = vector.load %arg0[%c0, %c0_0, %c0_1] : memref<9x16x128xf32, #tpu.memory_space<vmem>>, vector<1x16x128xf32>
    %1 = vector.shape_cast %0 : vector<1x16x128xf32> to vector<16x128xf32>
    %c0_2 = arith.constant 0 : index
    %c0_3 = arith.constant 0 : index
    %c0_4 = arith.constant 0 : index
    %2 = vector.load %arg1[%c0_2, %c0_3, %c0_4] : memref<9x16x1xf32, #tpu.memory_space<vmem>>, vector<1x16x1xf32>
    %3 = vector.shape_cast %2 : vector<1x16x1xf32> to vector<16x1xf32>
    %4 = vector.broadcast %3 : vector<16x1xf32> to vector<16x128xf32>
    %5 = arith.mulf %1, %4 : vector<16x128xf32>
    %c1 = arith.constant 1 : index
    %c0_5 = arith.constant 0 : index
    %c0_6 = arith.constant 0 : index
    %6 = vector.load %arg0[%c1, %c0_5, %c0_6] : memref<9x16x128xf32, #tpu.memory_space<vmem>>, vector<1x16x128xf32>
    %7 = vector.shape_cast %6 : vector<1x16x128xf32> to vector<16x128xf32>
    %c1_7 = arith.constant 1 : index
    %c0_8 = arith.constant 0 : index
    %c0_9 = arith.constant 0 : index
    %8 = vector.load %arg1[%c1_7, %c0_8, %c0_9] : memref<9x16x1xf32, #tpu.memory_space<vmem>>, vector<1x16x1xf32>
    %9 = vector.shape_cast %8 : vector<1x16x1xf32> to vector<16x1xf32>
    %10 = vector.broadcast %9 : vector<16x1xf32> to vector<16x128xf32>
    %11 = arith.mulf %7, %10 : vector<16x128xf32>
    %12 = arith.addf %5, %11 : vector<16x128xf32>
    %c2 = arith.constant 2 : index
    %c0_10 = arith.constant 0 : index
    %c0_11 = arith.constant 0 : index
    %13 = vector.load %arg0[%c2, %c0_10, %c0_11] : memref<9x16x128xf32, #tpu.memory_space<vmem>>, vector<1x16x128xf32>
    %14 = vector.shape_cast %13 : vector<1x16x128xf32> to vector<16x128xf32>
    %c2_12 = arith.constant 2 : index
    %c0_13 = arith.constant 0 : index
    %c0_14 = arith.constant 0 : index
    %15 = vector.load %arg1[%c2_12, %c0_13, %c0_14] : memref<9x16x1xf32, #tpu.memory_space<vmem>>, vector<1x16x1xf32>
    %16 = vector.shape_cast %15 : vector<1x16x1xf32> to vector<16x1xf32>
    %17 = vector.broadcast %16 : vector<16x1xf32> to vector<16x128xf32>
    %18 = arith.mulf %14, %17 : vector<16x128xf32>
    %19 = arith.addf %12, %18 : vector<16x128xf32>
    %c3 = arith.constant 3 : index
    %c0_15 = arith.constant 0 : index
    %c0_16 = arith.constant 0 : index
    %20 = vector.load %arg0[%c3, %c0_15, %c0_16] : memref<9x16x128xf32, #tpu.memory_space<vmem>>, vector<1x16x128xf32>
    %21 = vector.shape_cast %20 : vector<1x16x128xf32> to vector<16x128xf32>
    %c3_17 = arith.constant 3 : index
    %c0_18 = arith.constant 0 : index
    %c0_19 = arith.constant 0 : index
    %22 = vector.load %arg1[%c3_17, %c0_18, %c0_19] : memref<9x16x1xf32, #tpu.memory_space<vmem>>, vector<1x16x1xf32>
    %23 = vector.shape_cast %22 : vector<1x16x1xf32> to vector<16x1xf32>
    %24 = vector.broadcast %23 : vector<16x1xf32> to vector<16x128xf32>
    %25 = arith.mulf %21, %24 : vector<16x128xf32>
    %26 = arith.addf %19, %25 : vector<16x128xf32>
    %c4 = arith.constant 4 : index
    %c0_20 = arith.constant 0 : index
    %c0_21 = arith.constant 0 : index
    %27 = vector.load %arg0[%c4, %c0_20, %c0_21] : memref<9x16x128xf32, #tpu.memory_space<vmem>>, vector<1x16x128xf32>
    %28 = vector.shape_cast %27 : vector<1x16x128xf32> to vector<16x128xf32>
    %c4_22 = arith.constant 4 : index
    %c0_23 = arith.constant 0 : index
    %c0_24 = arith.constant 0 : index
    %29 = vector.load %arg1[%c4_22, %c0_23, %c0_24] : memref<9x16x1xf32, #tpu.memory_space<vmem>>, vector<1x16x1xf32>
    %30 = vector.shape_cast %29 : vector<1x16x1xf32> to vector<16x1xf32>
    %31 = vector.broadcast %30 : vector<16x1xf32> to vector<16x128xf32>
    %32 = arith.mulf %28, %31 : vector<16x128xf32>
    %33 = arith.addf %26, %32 : vector<16x128xf32>
    %c5 = arith.constant 5 : index
    %c0_25 = arith.constant 0 : index
    %c0_26 = arith.constant 0 : index
    %34 = vector.load %arg0[%c5, %c0_25, %c0_26] : memref<9x16x128xf32, #tpu.memory_space<vmem>>, vector<1x16x128xf32>
    %35 = vector.shape_cast %34 : vector<1x16x128xf32> to vector<16x128xf32>
    %c5_27 = arith.constant 5 : index
    %c0_28 = arith.constant 0 : index
    %c0_29 = arith.constant 0 : index
    %36 = vector.load %arg1[%c5_27, %c0_28, %c0_29] : memref<9x16x1xf32, #tpu.memory_space<vmem>>, vector<1x16x1xf32>
    %37 = vector.shape_cast %36 : vector<1x16x1xf32> to vector<16x1xf32>
    %38 = vector.broadcast %37 : vector<16x1xf32> to vector<16x128xf32>
    %39 = arith.mulf %35, %38 : vector<16x128xf32>
    %40 = arith.addf %33, %39 : vector<16x128xf32>
    %c6 = arith.constant 6 : index
    %c0_30 = arith.constant 0 : index
    %c0_31 = arith.constant 0 : index
    %41 = vector.load %arg0[%c6, %c0_30, %c0_31] : memref<9x16x128xf32, #tpu.memory_space<vmem>>, vector<1x16x128xf32>
    %42 = vector.shape_cast %41 : vector<1x16x128xf32> to vector<16x128xf32>
    %c6_32 = arith.constant 6 : index
    %c0_33 = arith.constant 0 : index
    %c0_34 = arith.constant 0 : index
    %43 = vector.load %arg1[%c6_32, %c0_33, %c0_34] : memref<9x16x1xf32, #tpu.memory_space<vmem>>, vector<1x16x1xf32>
    %44 = vector.shape_cast %43 : vector<1x16x1xf32> to vector<16x1xf32>
    %45 = vector.broadcast %44 : vector<16x1xf32> to vector<16x128xf32>
    %46 = arith.mulf %42, %45 : vector<16x128xf32>
    %47 = arith.addf %40, %46 : vector<16x128xf32>
    %c7 = arith.constant 7 : index
    %c0_35 = arith.constant 0 : index
    %c0_36 = arith.constant 0 : index
    %48 = vector.load %arg0[%c7, %c0_35, %c0_36] : memref<9x16x128xf32, #tpu.memory_space<vmem>>, vector<1x16x128xf32>
    %49 = vector.shape_cast %48 : vector<1x16x128xf32> to vector<16x128xf32>
    %c7_37 = arith.constant 7 : index
    %c0_38 = arith.constant 0 : index
    %c0_39 = arith.constant 0 : index
    %50 = vector.load %arg1[%c7_37, %c0_38, %c0_39] : memref<9x16x1xf32, #tpu.memory_space<vmem>>, vector<1x16x1xf32>
    %51 = vector.shape_cast %50 : vector<1x16x1xf32> to vector<16x1xf32>
    %52 = vector.broadcast %51 : vector<16x1xf32> to vector<16x128xf32>
    %53 = arith.mulf %49, %52 : vector<16x128xf32>
    %54 = arith.addf %47, %53 : vector<16x128xf32>
    %c8 = arith.constant 8 : index
    %c0_40 = arith.constant 0 : index
    %c0_41 = arith.constant 0 : index
    %55 = vector.load %arg0[%c8, %c0_40, %c0_41] : memref<9x16x128xf32, #tpu.memory_space<vmem>>, vector<1x16x128xf32>
    %56 = vector.shape_cast %55 : vector<1x16x128xf32> to vector<16x128xf32>
    %c8_42 = arith.constant 8 : index
    %c0_43 = arith.constant 0 : index
    %c0_44 = arith.constant 0 : index
    %57 = vector.load %arg1[%c8_42, %c0_43, %c0_44] : memref<9x16x1xf32, #tpu.memory_space<vmem>>, vector<1x16x1xf32>
    %58 = vector.shape_cast %57 : vector<1x16x1xf32> to vector<16x1xf32>
    %59 = vector.broadcast %58 : vector<16x1xf32> to vector<16x128xf32>
    %60 = arith.mulf %56, %59 : vector<16x128xf32>
    %61 = arith.addf %54, %60 : vector<16x128xf32>
    %c0_45 = arith.constant 0 : index
    %c0_46 = arith.constant 0 : index
    %62 = vector.load %arg2[%c0_45, %c0_46] : memref<16x1xf32, #tpu.memory_space<vmem>>, vector<16x1xf32>
    %63 = vector.broadcast %62 : vector<16x1xf32> to vector<16x128xf32>
    %64 = arith.addf %61, %63 : vector<16x128xf32>
    %cst = arith.constant 0.000000e+00 : f32
    %65 = vector.broadcast %cst : f32 to vector<16x128xf32>
    %66 = arith.maximumf %64, %65 : vector<16x128xf32>
    %c0_47 = arith.constant 0 : index
    %c0_48 = arith.constant 0 : index
    %67 = vector.load %arg3[%c0_47, %c0_48] : memref<16x16xbf16, #tpu.memory_space<vmem>>, vector<16x16xbf16>
    %68 = arith.truncf %66 : vector<16x128xf32> to vector<16x128xbf16>
    %cst_49 = arith.constant dense<0.000000e+00> : vector<16x128xf32>
    %69 = tpu.matmul %67, %68, %cst_49 {dimension_numbers = #tpu.dot_dimension_numbers<[1], [0], [0], [1], [0, 0, 1, 1], [], []>} : vector<16x16xbf16>, vector<16x128xbf16>, vector<16x128xf32> -> vector<16x128xf32>
    %c0_50 = arith.constant 0 : index
    %c0_51 = arith.constant 0 : index
    %70 = vector.load %arg4[%c0_50, %c0_51] : memref<16x1xf32, #tpu.memory_space<vmem>>, vector<16x1xf32>
    %71 = vector.broadcast %70 : vector<16x1xf32> to vector<16x128xf32>
    %72 = arith.addf %69, %71 : vector<16x128xf32>
    %c0_52 = arith.constant 0 : index
    %c0_53 = arith.constant 0 : index
    %73 = vector.load %arg5[%c0_52, %c0_53] : memref<16x128xf32, #tpu.memory_space<vmem>>, vector<16x128xf32>
    tpu.vector_store %arg5[%c0_52, %c0_53], %72 {strides = array<i32>} : memref<16x128xf32, #tpu.memory_space<vmem>>, vector<16x128xf32>,
    return
  }
}

module attributes {stable_mosaic.version = 11 : i64} {
  func.func @_vq_kernel(%arg0: memref<8x256xf32, #tpu.memory_space<vmem>>, %arg1: memref<64x8xf32, #tpu.memory_space<vmem>>, %arg2: memref<8x256xf32, #tpu.memory_space<vmem>>, %arg3: memref<1x256xi32, #tpu.memory_space<vmem>>, %arg4: memref<1x1xf32, #tpu.memory_space<vmem>>) attributes {dimension_semantics = [], scalar_prefetch = 0 : i64, scratch_operands = 0 : i64, tpu.core_type = #tpu.core_type<tc>} {
    %c0 = arith.constant 0 : index
    %c0_0 = arith.constant 0 : index
    %0 = vector.load %arg0[%c0, %c0_0] : memref<8x256xf32, #tpu.memory_space<vmem>>, vector<8x256xf32>
    %c0_1 = arith.constant 0 : index
    %c0_2 = arith.constant 0 : index
    %1 = vector.load %arg1[%c0_1, %c0_2] : memref<64x8xf32, #tpu.memory_space<vmem>>, vector<64x8xf32>
    %cst = arith.constant dense<0.000000e+00> : vector<64x256xf32>
    %2 = tpu.matmul %1, %0, %cst {dimension_numbers = #tpu.dot_dimension_numbers<[1], [0], [0], [1], [0, 0, 1, 1], [], []>} : vector<64x8xf32>, vector<8x256xf32>, vector<64x256xf32> -> vector<64x256xf32>
    %3 = arith.mulf %1, %1 : vector<64x8xf32>
    %cst_3 = arith.constant dense<0.000000e+00> : vector<64xf32>
    %4 = vector.multi_reduction <add>, %3, %cst_3 [1] : vector<64x8xf32> to vector<64xf32>
    %5 = vector.shape_cast %4 : vector<64xf32> to vector<64x1xf32>
    %cst_4 = arith.constant 2.000000e+00 : f32
    %6 = vector.broadcast %cst_4 : f32 to vector<64x256xf32>
    %7 = arith.mulf %6, %2 : vector<64x256xf32>
    %8 = vector.broadcast %5 : vector<64x1xf32> to vector<64x256xf32>
    %9 = arith.subf %8, %7 : vector<64x256xf32>
    %cst_5 = arith.constant dense<0x7F800000> : vector<256xf32>
    %10 = vector.multi_reduction <minimumf>, %9, %cst_5 [0] : vector<64x256xf32> to vector<256xf32>
    %11 = vector.shape_cast %10 : vector<256xf32> to vector<1x256xf32>
    %12 = tpu.iota {dimensions = array<i32: 0>} : vector<64x256xi32>
    %13 = vector.broadcast %11 : vector<1x256xf32> to vector<64x256xf32>
    %14 = arith.cmpf ole, %9, %13 : vector<64x256xf32>
    %c64_i32 = arith.constant 64 : i32
    %15 = vector.broadcast %c64_i32 : i32 to vector<64x256xi32>
    %16 = arith.select %14, %12, %15 : vector<64x256xi1>, vector<64x256xi32>
    %cst_6 = arith.constant dense<2147483647> : vector<256xi32>
    %17 = vector.multi_reduction <minsi>, %16, %cst_6 [0] : vector<64x256xi32> to vector<256xi32>
    %18 = vector.shape_cast %17 : vector<256xi32> to vector<1x256xi32>
    %c0_7 = arith.constant 0 : index
    %c0_8 = arith.constant 0 : index
    %19 = vector.load %arg3[%c0_7, %c0_8] : memref<1x256xi32, #tpu.memory_space<vmem>>, vector<1x256xi32>
    tpu.vector_store %arg3[%c0_7, %c0_8], %18 {strides = array<i32>} : memref<1x256xi32, #tpu.memory_space<vmem>>, vector<1x256xi32>,
    %20 = vector.broadcast %18 : vector<1x256xi32> to vector<64x256xi32>
    %21 = arith.cmpi eq, %12, %20 : vector<64x256xi32>
    %22 = arith.extui %21 : vector<64x256xi1> to vector<64x256xi32>
    %23 = arith.sitofp %22 : vector<64x256xi32> to vector<64x256xf32>
    %cst_9 = arith.constant dense<0.000000e+00> : vector<8x256xf32>
    %24 = tpu.matmul %1, %23, %cst_9 {dimension_numbers = #tpu.dot_dimension_numbers<[0], [0], [1], [1], [0, 1, 1, 1], [], []>} : vector<64x8xf32>, vector<64x256xf32>, vector<8x256xf32> -> vector<8x256xf32>
    %c0_10 = arith.constant 0 : index
    %c0_11 = arith.constant 0 : index
    %25 = vector.load %arg2[%c0_10, %c0_11] : memref<8x256xf32, #tpu.memory_space<vmem>>, vector<8x256xf32>
    tpu.vector_store %arg2[%c0_10, %c0_11], %24 {strides = array<i32>} : memref<8x256xf32, #tpu.memory_space<vmem>>, vector<8x256xf32>,
    %26 = arith.subf %24, %0 : vector<8x256xf32>
    %27 = arith.mulf %26, %26 : vector<8x256xf32>
    %cst_12 = arith.constant dense<0.000000e+00> : vector<8xf32>
    %28 = vector.multi_reduction <add>, %27, %cst_12 [1] : vector<8x256xf32> to vector<8xf32>
    %29 = vector.shape_cast %28 : vector<8xf32> to vector<8x1xf32>
    %cst_13 = arith.constant dense<0.000000e+00> : vector<1xf32>
    %30 = vector.multi_reduction <add>, %29, %cst_13 [0] : vector<8x1xf32> to vector<1xf32>
    %31 = vector.shape_cast %30 : vector<1xf32> to vector<1x1xf32>
    %cst_14 = arith.constant 9.765625E-4 : f32
    %32 = vector.broadcast %cst_14 : f32 to vector<1x1xf32>
    %33 = arith.mulf %31, %32 : vector<1x1xf32>
    %c0_15 = arith.constant 0 : index
    %c0_16 = arith.constant 0 : index
    %34 = vector.load %arg4[%c0_15, %c0_16] : memref<1x1xf32, #tpu.memory_space<vmem>>, vector<1x1xf32>
    tpu.vector_store %arg4[%c0_15, %c0_16], %33 {strides = array<i32>} : memref<1x1xf32, #tpu.memory_space<vmem>>, vector<1x1xf32>,
    return
  }
}

module attributes {stable_mosaic.version = 11 : i64} {
  func.func @_matmul_bias_T_kernel(%arg0: i32, %arg1: memref<144x512xbf16, #tpu.memory_space<vmem>>, %arg2: memref<16x144xbf16, #tpu.memory_space<vmem>>, %arg3: memref<16x1xf32, #tpu.memory_space<vmem>>, %arg4: memref<16x512xf32, #tpu.memory_space<vmem>>) attributes {dimension_semantics = [#tpu.dimension_semantics<parallel>], iteration_bounds = array<i64: 1>, scalar_prefetch = 0 : i64, scratch_operands = 0 : i64, tpu.core_type = #tpu.core_type<tc>, window_params = [{transform_indices = @transform_0, window_bounds = array<i64: 144, 512>}, {pipeline_mode = #tpu.pipeline_mode<synchronous>, transform_indices = @transform_1, window_bounds = array<i64: 16, 144>}, {pipeline_mode = #tpu.pipeline_mode<synchronous>, transform_indices = @transform_2, window_bounds = array<i64: 16, 1>}, {transform_indices = @transform_3, window_bounds = array<i64: 16, 512>}]} {
    %c0 = arith.constant 0 : index
    %c0_0 = arith.constant 0 : index
    %0 = vector.load %arg2[%c0, %c0_0] : memref<16x144xbf16, #tpu.memory_space<vmem>>, vector<16x144xbf16>
    %c0_1 = arith.constant 0 : index
    %c0_2 = arith.constant 0 : index
    %1 = vector.load %arg1[%c0_1, %c0_2] : memref<144x512xbf16, #tpu.memory_space<vmem>>, vector<144x512xbf16>
    %cst = arith.constant dense<0.000000e+00> : vector<16x512xf32>
    %2 = tpu.matmul %0, %1, %cst {dimension_numbers = #tpu.dot_dimension_numbers<[1], [0], [0], [1], [0, 0, 1, 1], [], []>} : vector<16x144xbf16>, vector<144x512xbf16>, vector<16x512xf32> -> vector<16x512xf32>
    %c0_3 = arith.constant 0 : index
    %c0_4 = arith.constant 0 : index
    %3 = vector.load %arg3[%c0_3, %c0_4] : memref<16x1xf32, #tpu.memory_space<vmem>>, vector<16x1xf32>
    %4 = vector.broadcast %3 : vector<16x1xf32> to vector<16x512xf32>
    %5 = arith.addf %2, %4 : vector<16x512xf32>
    %cst_5 = arith.constant 0.000000e+00 : f32
    %6 = vector.broadcast %cst_5 : f32 to vector<16x512xf32>
    %7 = arith.maximumf %5, %6 : vector<16x512xf32>
    %c0_6 = arith.constant 0 : index
    %c0_7 = arith.constant 0 : index
    %8 = vector.load %arg4[%c0_6, %c0_7] : memref<16x512xf32, #tpu.memory_space<vmem>>, vector<16x512xf32>
    tpu.vector_store %arg4[%c0_6, %c0_7], %7 {strides = array<i32>} : memref<16x512xf32, #tpu.memory_space<vmem>>, vector<16x512xf32>,
    return
  }
  func.func @transform_0(%arg0: i32) -> (i32, i32) {
    %c0_i32 = arith.constant 0 : i32
    %c0_i32_0 = arith.constant 0 : i32
    return %c0_i32, %arg0 : i32, i32
  }
  func.func @transform_1(%arg0: i32) -> (i32, i32) {
    %c0_i32 = arith.constant 0 : i32
    %c0_i32_0 = arith.constant 0 : i32
    %c0_i32_1 = arith.constant 0 : i32
    return %c0_i32, %c0_i32_0 : i32, i32
  }
  func.func @transform_2(%arg0: i32) -> (i32, i32) {
    %c0_i32 = arith.constant 0 : i32
    %c0_i32_0 = arith.constant 0 : i32
    %c0_i32_1 = arith.constant 0 : i32
    return %c0_i32, %c0_i32_0 : i32, i32
  }
  func.func @transform_3(%arg0: i32) -> (i32, i32) {
    %c0_i32 = arith.constant 0 : i32
    %c0_i32_0 = arith.constant 0 : i32
    return %c0_i32, %arg0 : i32, i32
  }
}

module attributes {stable_mosaic.version = 11 : i64} {
  func.func @_matmul_bias_T_kernel(%arg0: i32, %arg1: memref<144x512xbf16, #tpu.memory_space<vmem>>, %arg2: memref<3x144xbf16, #tpu.memory_space<vmem>>, %arg3: memref<3x1xf32, #tpu.memory_space<vmem>>, %arg4: memref<3x512xf32, #tpu.memory_space<vmem>>) attributes {dimension_semantics = [#tpu.dimension_semantics<parallel>], iteration_bounds = array<i64: 4>, scalar_prefetch = 0 : i64, scratch_operands = 0 : i64, tpu.core_type = #tpu.core_type<tc>, window_params = [{transform_indices = @transform_0, window_bounds = array<i64: 144, 512>}, {pipeline_mode = #tpu.pipeline_mode<synchronous>, transform_indices = @transform_1, window_bounds = array<i64: 3, 144>}, {pipeline_mode = #tpu.pipeline_mode<synchronous>, transform_indices = @transform_2, window_bounds = array<i64: 3, 1>}, {transform_indices = @transform_3, window_bounds = array<i64: 3, 512>}]} {
    %c0 = arith.constant 0 : index
    %c0_0 = arith.constant 0 : index
    %0 = vector.load %arg2[%c0, %c0_0] : memref<3x144xbf16, #tpu.memory_space<vmem>>, vector<3x144xbf16>
    %c0_1 = arith.constant 0 : index
    %c0_2 = arith.constant 0 : index
    %1 = vector.load %arg1[%c0_1, %c0_2] : memref<144x512xbf16, #tpu.memory_space<vmem>>, vector<144x512xbf16>
    %cst = arith.constant dense<0.000000e+00> : vector<3x512xf32>
    %2 = tpu.matmul %0, %1, %cst {dimension_numbers = #tpu.dot_dimension_numbers<[1], [0], [0], [1], [0, 0, 1, 1], [], []>} : vector<3x144xbf16>, vector<144x512xbf16>, vector<3x512xf32> -> vector<3x512xf32>
    %c0_3 = arith.constant 0 : index
    %c0_4 = arith.constant 0 : index
    %3 = vector.load %arg3[%c0_3, %c0_4] : memref<3x1xf32, #tpu.memory_space<vmem>>, vector<3x1xf32>
    %4 = vector.broadcast %3 : vector<3x1xf32> to vector<3x512xf32>
    %5 = arith.addf %2, %4 : vector<3x512xf32>
    %c0_5 = arith.constant 0 : index
    %c0_6 = arith.constant 0 : index
    %6 = vector.load %arg4[%c0_5, %c0_6] : memref<3x512xf32, #tpu.memory_space<vmem>>, vector<3x512xf32>
    tpu.vector_store %arg4[%c0_5, %c0_6], %5 {strides = array<i32>} : memref<3x512xf32, #tpu.memory_space<vmem>>, vector<3x512xf32>,
    return
  }
  func.func @transform_0(%arg0: i32) -> (i32, i32) {
    %c0_i32 = arith.constant 0 : i32
    %c0_i32_0 = arith.constant 0 : i32
    return %c0_i32, %arg0 : i32, i32
  }
  func.func @transform_1(%arg0: i32) -> (i32, i32) {
    %c0_i32 = arith.constant 0 : i32
    %c0_i32_0 = arith.constant 0 : i32
    %c0_i32_1 = arith.constant 0 : i32
    return %c0_i32, %c0_i32_0 : i32, i32
  }
  func.func @transform_2(%arg0: i32) -> (i32, i32) {
    %c0_i32 = arith.constant 0 : i32
    %c0_i32_0 = arith.constant 0 : i32
    %c0_i32_1 = arith.constant 0 : i32
    return %c0_i32, %c0_i32_0 : i32, i32
  }
  func.func @transform_3(%arg0: i32) -> (i32, i32) {
    %c0_i32 = arith.constant 0 : i32
    %c0_i32_0 = arith.constant 0 : i32
    return %c0_i32, %arg0 : i32, i32
  }
}

</mosaic_0001>

<llo_original>
// kernel: mobilenet100_forward.5
$region0: #{mobilenet100_forward.5}
  #allocation0 [shape = 'u32[]', space=smem, size = 0x4, offset = 0x4, fixed_abs, tag = 'smem constant byte address 0x4 - core index']
  #allocation1 [shape = 'u32[144,128]{1,0:T(1,128)}', space=vmem, size = 0x12000, scoped, tag = 'internal scratch']
  %s0 = inlined_call_operand.vmem [shape: bf16[27,512], index: 0, kind: input, shape index: {}]
  %s1 = inlined_call_operand.vmem [shape: bf16[16,27], index: 1, kind: input, shape index: {}]
  %s2 = inlined_call_operand.vmem [shape: f32[16,1], index: 2, kind: input, shape index: {}]
  %s3 = inlined_call_operand.vmem [shape: f32[16,512], index: 3, kind: output, shape index: {}]
  %s4 = sld [smem:[#allocation0]]
  $region22: #{mobilenet100_forward.5} parent=0
    _
  %s6 = ssub.s32 1, %s4
  %s7 = scalar_select 0, %s6, %s4
  // Predicated region
  $region2: #{mobilenet100_forward.5} parent=0 // pred_check
    _
  $region3: #{mobilenet100_forward.5} parent=0 // pred_check_branch
    %9 = sbr.rel (0) target = $region5
  $region4: #{mobilenet100_forward.5} parent=0 // pred_region
    _
  $region5: #{mobilenet100_forward.5} parent=0 // pred_fallthru
    _
  // Predicated region
  $region6: #{mobilenet100_forward.5} parent=0 // pred_check
    _
  $region7: #{mobilenet100_forward.5} parent=0 // pred_check_branch
    %11 = sbr.rel (0) target = $region9
  $region8: #{mobilenet100_forward.5} parent=0 // pred_region
    _
  $region9: #{mobilenet100_forward.5} parent=0 // pred_fallthru
    _
  // Predicated region
  $region10: #{mobilenet100_forward.5} parent=0 // pred_check
    _
  $region11: #{mobilenet100_forward.5} parent=0 // pred_check_branch
    %13 = sbr.rel (0) target = $region13
  $region12: #{mobilenet100_forward.5} parent=0 // pred_region
    _
  $region13: #{mobilenet100_forward.5} parent=0 // pred_fallthru
    _
  %v15 = vld [vmem:[%s1] sm:$0xf]
  %v16 = vld [vmem:[%s1 + $0x4] sm:$0xf]
  %v17 = vld [vmem:[%s0] sm:$0xff]
  %v18 = vld [vmem:[%s0 + $0x8] sm:$0xff]
  %v19 = vld [vmem:[%s0 + $0x10] sm:$0xff]
  %v20 = vld [vmem:[%s0 + $0x18] sm:$0xff]
  %v21 = vld [vmem:[%s0 + $0x20] sm:$0xff]
  %v22 = vld [vmem:[%s0 + $0x28] sm:$0xff]
  %v23 = vld [vmem:[%s0 + $0x30] sm:$0x33]
  %v24 = vld [vmem:[%s0 + $0x38] sm:$0x33]
  %v25 = vld [vmem:[%s2] sm:$0xff]
  %v26 = vld [vmem:[%s2 + $0x8] sm:$0xff]
  %28 = vset.pattern.permute.xlu0 0
  %29 = vperm.xlu0 %28, %v25
  %v30 = vpop.permute.xlu0 %29
  %33 = vset.pattern.permute.xlu0 0
  %34 = vperm.xlu0 %33, %v26
  %v35 = vpop.permute.xlu0 %34
  %v39 = vunpack.c.l.b16 %v15
  %v40 = vunpack.c.l.b16 %v16
  %v41 = vpack.c.b16 %v40, %v39
  %v50 = vunpack.c.l.b16 %v17
  %v51 = vunpack.c.h.b16 %v17
  %v52 = vunpack.c.l.b16 %v18
  %v53 = vunpack.c.h.b16 %v18
  %v54 = vunpack.c.l.b16 %v19
  %v55 = vunpack.c.h.b16 %v19
  %v56 = vunpack.c.l.b16 %v20
  %v57 = vunpack.c.h.b16 %v20
  %v58 = vunpack.c.l.b16 %v21
  %v59 = vunpack.c.h.b16 %v21
  %v60 = vunpack.c.l.b16 %v22
  %v61 = vunpack.c.h.b16 %v22
  %v62 = vunpack.c.l.b16 %v23
  %v63 = vunpack.c.h.b16 %v23
  %v64 = vunpack.c.l.b16 %v24
  %v65 = vunpack.c.h.b16 %v24
  %v66 = vpack.c.b16 %v54, %v50
  %v67 = vpack.c.b16 %v55, %v51
  %v68 = vpack.c.b16 %v56, %v52
  %v69 = vpack.c.b16 %v57, %v53
  %v70 = vpack.c.b16 %v62, %v58
  %v71 = vpack.c.b16 %v63, %v59
  %v72 = vpack.c.b16 %v64, %v60
  %v73 = vpack.c.b16 %v65, %v61
  %vm78 = vcmask 220160
  %v80 = vsel %vm78, %v41, 0
  %vm82 = vcmask 1044480
  %vm83 = vcmask 1045504
  %v84 = vsel %vm82, 4294967295, 65535
  %v85 = vsel %vm83, %v84, 0
  %v87 = vand.u32 %v70, %v85
  %v90 = vand.u32 %v71, %v85
  %v93 = vand.u32 %v72, %v85
  %v96 = vand.u32 %v73, %v85
  %98 = vmatprep.subr.bf16.mxu0 0
  %99 = vmatpush1.bf16.msra.mxu0 0
  %100 = vmatprep.subr.bf16.mxu0 0
  %101 = vmatpush1.bf16.msra.mxu0 0
  %102 = vmatprep.subr.bf16.mxu0 0
  %103 = vmatpush1.bf16.msra.mxu0 0
  %104 = vmatprep.subr.bf16.mxu0 0
  %105 = vmatpush1.bf16.msra.mxu0 0
  %106 = vmatprep.subr.bf16.mxu0 0
  %107 = vmatpush1.bf16.msra.mxu0 0
  %108 = vmatprep.subr.bf16.mxu0 0
  %109 = vmatpush1.bf16.msra.mxu0 0
  %110 = vmatprep.subr.bf16.mxu0 %v90
  %111 = vmatpush1.bf16.msra.mxu0 %v87
  %112 = vmatprep.subr.bf16.mxu0 %v67
  %113 = vmatpush1.bf16.msra.mxu0 %v66
  %114 = vmatprep.subr.bf16.mxu0 0
  %115 = vmatpush2.bf16.msra.mxu0 0
  %116 = vmatprep.subr.bf16.mxu0 0
  %117 = vmatpush2.bf16.msra.mxu0 0
  %118 = vmatprep.subr.bf16.mxu0 0
  %119 = vmatpush2.bf16.msra.mxu0 0
  %120 = vmatprep.subr.bf16.mxu0 0
  %121 = vmatpush2.bf16.msra.mxu0 0
  %122 = vmatprep.subr.bf16.mxu0 0
  %123 = vmatpush2.bf16.msra.mxu0 0
  %124 = vmatprep.subr.bf16.mxu0 0
  %125 = vmatpush2.bf16.msra.mxu0 0
  %126 = vmatprep.subr.bf16.mxu0 0
  %127 = vmatpush2.bf16.msra.mxu0 0
  %128 = vmatprep.subr.bf16.mxu0 0
  %129 = vmatpush2.bf16.msra.mxu0 0
  %130 = vmatprep.mubr.bf16.mxu0 0
  %131 = vmatmul.mubr.bf16.gmra.mxu0 %v80
  %v132 = vpop.f32.mrf.mxu0
  %v133 = vadd.f32 %v30, %v132
  %v134 = vpop.f32.mrf.mxu0
  %v135 = vadd.f32 %v30, %v134
  %v136 = vpop.f32.mrf.mxu0
  %v137 = vadd.f32 %v35, %v136
  %v138 = vpop.f32.mrf.mxu0
  %v139 = vadd.f32 %v35, %v138
  %140 = vdwg.mxu0
  %141 = vmatprep.subr.bf16.mxu0 0
  %142 = vmatpush1.bf16.msra.mxu0 0
  %143 = vmatprep.subr.bf16.mxu0 0
  %144 = vmatpush1.bf16.msra.mxu0 0
  %145 = vmatprep.subr.bf16.mxu0 0
  %146 = vmatpush1.bf16.msra.mxu0 0
  %147 = vmatprep.subr.bf16.mxu0 0
  %148 = vmatpush1.bf16.msra.mxu0 0
  %149 = vmatprep.subr.bf16.mxu0 0
  %150 = vmatpush1.bf16.msra.mxu0 0
  %151 = vmatprep.subr.bf16.mxu0 0
  %152 = vmatpush1.bf16.msra.mxu0 0
  %153 = vmatprep.subr.bf16.mxu0 %v96
  %154 = vmatpush1.bf16.msra.mxu0 %v93
  %155 = vmatprep.subr.bf16.mxu0 %v69
  %156 = vmatpush1.bf16.msra.mxu0 %v68
  %157 = vmatprep.subr.bf16.mxu0 0
  %158 = vmatpush2.bf16.msra.mxu0 0
  %159 = vmatprep.subr.bf16.mxu0 0
  %160 = vmatpush2.bf16.msra.mxu0 0
  %161 = vmatprep.subr.bf16.mxu0 0
  %162 = vmatpush2.bf16.msra.mxu0 0
  %163 = vmatprep.subr.bf16.mxu0 0
  %164 = vmatpush2.bf16.msra.mxu0 0
  %165 = vmatprep.subr.bf16.mxu0 0
  %166 = vmatpush2.bf16.msra.mxu0 0
  %167 = vmatprep.subr.bf16.mxu0 0
  %168 = vmatpush2.bf16.msra.mxu0 0
  %169 = vmatprep.subr.bf16.mxu0 0
  %170 = vmatpush2.bf16.msra.mxu0 0
  %171 = vmatprep.subr.bf16.mxu0 0
  %172 = vmatpush2.bf16.msra.mxu0 0
  %173 = vmatprep.mubr.bf16.mxu0 0
  %174 = vmatmul.mubr.bf16.gmra.mxu0 %v80
  %v175 = vpop.f32.mrf.mxu0
  %v176 = vadd.f32 %v30, %v175
  %v177 = vpop.f32.mrf.mxu0
  %v178 = vadd.f32 %v30, %v177
  %v179 = vpop.f32.mrf.mxu0
  %v180 = vadd.f32 %v35, %v179
  %v181 = vpop.f32.mrf.mxu0
  %v182 = vadd.f32 %v35, %v181
  %183 = vdwg.mxu0
  %v184 = vmax.f32 %v133, 0.0
  %v185 = vmax.f32 %v135, 0.0
  %v186 = vmax.f32 %v176, 0.0
  %v187 = vmax.f32 %v178, 0.0
  %v188 = vmax.f32 %v137, 0.0
  %v189 = vmax.f32 %v139, 0.0
  %v190 = vmax.f32 %v180, 0.0
  %v191 = vmax.f32 %v182, 0.0
  %192 = vst [vmem:[%s3] sm:$0xff] %v184
  %193 = vst [vmem:[%s3 + $0x8] sm:$0xff] %v185
  %194 = vst [vmem:[%s3 + $0x10] sm:$0xff] %v186
  %195 = vst [vmem:[%s3 + $0x18] sm:$0xff] %v187
  %196 = vst [vmem:[%s3 + $0x20] sm:$0xff] %v188
  %197 = vst [vmem:[%s3 + $0x28] sm:$0xff] %v189
  %198 = vst [vmem:[%s3 + $0x30] sm:$0xff] %v190
  %199 = vst [vmem:[%s3 + $0x38] sm:$0xff] %v191
  // Predicated region
  $region14: #{mobilenet100_forward.5} parent=0 // pred_check
    _
  $region15: #{mobilenet100_forward.5} parent=0 // pred_check_branch
    %201 = sbr.rel (0) target = $region17
  $region16: #{mobilenet100_forward.5} parent=0 // pred_region
    _
  $region17: #{mobilenet100_forward.5} parent=0 // pred_fallthru
    _
  // Predicated region
  $region18: #{mobilenet100_forward.5} parent=0 // pred_check
    _
  $region19: #{mobilenet100_forward.5} parent=0 // pred_check_branch
    %203 = sbr.rel (0) target = $region21
  $region20: #{mobilenet100_forward.5} parent=0 // pred_region
    _
  $region21: #{mobilenet100_forward.5} parent=0 // pred_fallthru
    _

// kernel: mobilenet100_forward.6
$region0: #{mobilenet100_forward.6}
  #allocation0 [shape = 'u32[]', space=smem, size = 0x4, offset = 0x4, fixed_abs, tag = 'smem constant byte address 0x4 - core index']
  #allocation1 [shape = 'u32[144,128]{1,0:T(1,128)}', space=vmem, size = 0x12000, scoped, tag = 'internal scratch']
  %s0 = inlined_call_operand.vmem [shape: f32[9,16,128], index: 0, kind: input, shape index: {}]
  %s1 = inlined_call_operand.vmem [shape: f32[9,16,1], index: 1, kind: input, shape index: {}]
  %s2 = inlined_call_operand.vmem [shape: f32[16,1], index: 2, kind: input, shape index: {}]
  %s3 = inlined_call_operand.vmem [shape: bf16[16,16], index: 3, kind: input, shape index: {}]
  %s4 = inlined_call_operand.vmem [shape: f32[16,1], index: 4, kind: input, shape index: {}]
  %s5 = inlined_call_operand.vmem [shape: f32[16,128], index: 5, kind: output, shape index: {}]
  %s6 = sld [smem:[#allocation0]]
  $region30: #{mobilenet100_forward.6} parent=0
    _
  %s8 = ssub.s32 1, %s6
  %s9 = scalar_select 0, %s8, %s6
  // Predicated region
  $region2: #{mobilenet100_forward.6} parent=0 // pred_check
    _
  $region3: #{mobilenet100_forward.6} parent=0 // pred_check_branch
    %11 = sbr.rel (0) target = $region5
  $region4: #{mobilenet100_forward.6} parent=0 // pred_region
    _
  $region5: #{mobilenet100_forward.6} parent=0 // pred_fallthru
    _
  // Predicated region
  $region6: #{mobilenet100_forward.6} parent=0 // pred_check
    _
  $region7: #{mobilenet100_forward.6} parent=0 // pred_check_branch
    %13 = sbr.rel (0) target = $region9
  $region8: #{mobilenet100_forward.6} parent=0 // pred_region
    _
  $region9: #{mobilenet100_forward.6} parent=0 // pred_fallthru
    _
  // Predicated region
  $region10: #{mobilenet100_forward.6} parent=0 // pred_check
    _
  $region11: #{mobilenet100_forward.6} parent=0 // pred_check_branch
    %15 = sbr.rel (0) target = $region13
  $region12: #{mobilenet100_forward.6} parent=0 // pred_region
    _
  $region13: #{mobilenet100_forward.6} parent=0 // pred_fallthru
    _
  // Predicated region
  $region14: #{mobilenet100_forward.6} parent=0 // pred_check
    _
  $region15: #{mobilenet100_forward.6} parent=0 // pred_check_branch
    %17 = sbr.rel (0) target = $region17
  $region16: #{mobilenet100_forward.6} parent=0 // pred_region
    _
  $region17: #{mobilenet100_forward.6} parent=0 // pred_fallthru
    _
  // Predicated region
  $region18: #{mobilenet100_forward.6} parent=0 // pred_check
    _
  $region19: #{mobilenet100_forward.6} parent=0 // pred_check_branch
    %19 = sbr.rel (0) target = $region21
  $region20: #{mobilenet100_forward.6} parent=0 // pred_region
    _
  $region21: #{mobilenet100_forward.6} parent=0 // pred_fallthru
    _
  %v21 = vld [vmem:[%s0] sm:$0xff]
  %v22 = vld [vmem:[%s0 + $0x8] sm:$0xff]
  %v23 = vld [vmem:[%s1] sm:$0xff]
  %v24 = vld [vmem:[%s1 + $0x8] sm:$0xff]
  %26 = vset.pattern.permute.xlu0 0
  %27 = vperm.xlu0 %26, %v23
  %v28 = vpop.permute.xlu0 %27
  %31 = vset.pattern.permute.xlu0 0
  %32 = vperm.xlu0 %31, %v24
  %v33 = vpop.permute.xlu0 %32
  %v35 = vmul.f32 %v21, %v28
  %v36 = vmul.f32 %v22, %v33
  %s37 = scalar_lea.vmem %s0, 16
  %v38 = vld [vmem:[%s37] sm:$0xff]
  %v39 = vld [vmem:[%s37 + $0x8] sm:$0xff]
  %s40 = scalar_lea.vmem %s1, 16
  %v41 = vld [vmem:[%s40] sm:$0xff]
  %v42 = vld [vmem:[%s40 + $0x8] sm:$0xff]
  %44 = vset.pattern.permute.xlu0 0
  %45 = vperm.xlu0 %44, %v41
  %v46 = vpop.permute.xlu0 %45
  %49 = vset.pattern.permute.xlu0 0
  %50 = vperm.xlu0 %49, %v42
  %v51 = vpop.permute.xlu0 %50
  %v53 = vmul.f32 %v38, %v46
  %v54 = vmul.f32 %v39, %v51
  %v55 = vadd.f32 %v35, %v53
  %v56 = vadd.f32 %v36, %v54
  %s57 = scalar_lea.vmem %s0, 32
  %v58 = vld [vmem:[%s57] sm:$0xff]
  %v59 = vld [vmem:[%s57 + $0x8] sm:$0xff]
  %s60 = scalar_lea.vmem %s1, 32
  %v61 = vld [vmem:[%s60] sm:$0xff]
  %v62 = vld [vmem:[%s60 + $0x8] sm:$0xff]
  %64 = vset.pattern.permute.xlu0 0
  %65 = vperm.xlu0 %64, %v61
  %v66 = vpop.permute.xlu0 %65
  %69 = vset.pattern.permute.xlu0 0
  %70 = vperm.xlu0 %69, %v62
  %v71 = vpop.permute.xlu0 %70
  %v73 = vmul.f32 %v58, %v66
  %v74 = vmul.f32 %v59, %v71
  %v75 = vadd.f32 %v55, %v73
  %v76 = vadd.f32 %v56, %v74
  %s77 = scalar_lea.vmem %s0, 48
  %v78 = vld [vmem:[%s77] sm:$0xff]
  %v79 = vld [vmem:[%s77 + $0x8] sm:$0xff]
  %s80 = scalar_lea.vmem %s1, 48
  %v81 = vld [vmem:[%s80] sm:$0xff]
  %v82 = vld [vmem:[%s80 + $0x8] sm:$0xff]
  %84 = vset.pattern.permute.xlu0 0
  %85 = vperm.xlu0 %84, %v81
  %v86 = vpop.permute.xlu0 %85
  %89 = vset.pattern.permute.xlu0 0
  %90 = vperm.xlu0 %89, %v82
  %v91 = vpop.permute.xlu0 %90
  %v93 = vmul.f32 %v78, %v86
  %v94 = vmul.f32 %v79, %v91
  %v95 = vadd.f32 %v75, %v93
  %v96 = vadd.f32 %v76, %v94
  %s97 = scalar_lea.vmem %s0, 64
  %v98 = vld [vmem:[%s97] sm:$0xff]
  %v99 = vld [vmem:[%s97 + $0x8] sm:$0xff]
  %s100 = scalar_lea.vmem %s1, 64
  %v101 = vld [vmem:[%s100] sm:$0xff]
  %v102 = vld [vmem:[%s100 + $0x8] sm:$0xff]
  %104 = vset.pattern.permute.xlu0 0
  %105 = vperm.xlu0 %104, %v101
  %v106 = vpop.permute.xlu0 %105
  %109 = vset.pattern.permute.xlu0 0
  %110 = vperm.xlu0 %109, %v102
  %v111 = vpop.permute.xlu0 %110
  %v113 = vmul.f32 %v98, %v106
  %v114 = vmul.f32 %v99, %v111
  %v115 = vadd.f32 %v95, %v113
  %v116 = vadd.f32 %v96, %v114
  %s117 = scalar_lea.vmem %s0, 80
  %v118 = vld [vmem:[%s117] sm:$0xff]
  %v119 = vld [vmem:[%s117 + $0x8] sm:$0xff]
  %s120 = scalar_lea.vmem %s1, 80
  %v121 = vld [vmem:[%s120] sm:$0xff]
  %v122 = vld [vmem:[%s120 + $0x8] sm:$0xff]
  %124 = vset.pattern.permute.xlu0 0
  %125 = vperm.xlu0 %124, %v121
  %v126 = vpop.permute.xlu0 %125
  %129 = vset.pattern.permute.xlu0 0
  %130 = vperm.xlu0 %129, %v122
  %v131 = vpop.permute.xlu0 %130
  %v133 = vmul.f32 %v118, %v126
  %v134 = vmul.f32 %v119, %v131
  %v135 = vadd.f32 %v115, %v133
  %v136 = vadd.f32 %v116, %v134
  %s137 = scalar_lea.vmem %s0, 96
  %v138 = vld [vmem:[%s137] sm:$0xff]
  %v139 = vld [vmem:[%s137 + $0x8] sm:$0xff]
  %s140 = scalar_lea.vmem %s1, 96
  %v141 = vld [vmem:[%s140] sm:$0xff]
  %v142 = vld [vmem:[%s140 + $0x8] sm:$0xff]
  %144 = vset.pattern.permute.xlu0 0
  %145 = vperm.xlu0 %144, %v141
  %v146 = vpop.permute.xlu0 %145
  %149 = vset.pattern.permute.xlu0 0
  %150 = vperm.xlu0 %149, %v142
  %v151 = vpop.permute.xlu0 %150
  %v153 = vmul.f32 %v138, %v146
  %v154 = vmul.f32 %v139, %v151
  %v155 = vadd.f32 %v135, %v153
  %v156 = vadd.f32 %v136, %v154
  %s157 = scalar_lea.vmem %s0, 112
  %v158 = vld [vmem:[%s157] sm:$0xff]
  %v159 = vld [vmem:[%s157 + $0x8] sm:$0xff]
  %s160 = scalar_lea.vmem %s1, 112
  %v161 = vld [vmem:[%s160] sm:$0xff]
  %v162 = vld [vmem:[%s160 + $0x8] sm:$0xff]
  %164 = vset.pattern.permute.xlu0 0
  %165 = vperm.xlu0 %164, %v161
  %v166 = vpop.permute.xlu0 %165
  %169 = vset.pattern.permute.xlu0 0
  %170 = vperm.xlu0 %169, %v162
  %v171 = vpop.permute.xlu0 %170
  %v173 = vmul.f32 %v158, %v166
  %v174 = vmul.f32 %v159, %v171
  %v175 = vadd.f32 %v155, %v173
  %v176 = vadd.f32 %v156, %v174
  %s177 = scalar_lea.vmem %s0, 128
  %v178 = vld [vmem:[%s177] sm:$0xff]
  %v179 = vld [vmem:[%s177 + $0x8] sm:$0xff]
  %s180 = scalar_lea.vmem %s1, 128
  %v181 = vld [vmem:[%s180] sm:$0xff]
  %v182 = vld [vmem:[%s180 + $0x8] sm:$0xff]
  %184 = vset.pattern.permute.xlu0 0
  %185 = vperm.xlu0 %184, %v181
  %v186 = vpop.permute.xlu0 %185
  %189 = vset.pattern.permute.xlu0 0
  %190 = vperm.xlu0 %189, %v182
  %v191 = vpop.permute.xlu0 %190
  %v193 = vmul.f32 %v178, %v186
  %v194 = vmul.f32 %v179, %v191
  %v195 = vadd.f32 %v175, %v193
  %v196 = vadd.f32 %v176, %v194
  %v197 = vld [vmem:[%s2] sm:$0xff]
  %v198 = vld [vmem:[%s2 + $0x8] sm:$0xff]
  %200 = vset.pattern.permute.xlu0 0
  %201 = vperm.xlu0 %200, %v197
  %v202 = vpop.permute.xlu0 %201
  %205 = vset.pattern.permute.xlu0 0
  %206 = vperm.xlu0 %205, %v198
  %v207 = vpop.permute.xlu0 %206
  %v209 = vadd.f32 %v195, %v202
  %v210 = vadd.f32 %v196, %v207
  %v211 = vmax.f32 %v209, 0.0
  %v212 = vmax.f32 %v210, 0.0
  %v213 = vld [vmem:[%s3] sm:$0xf]
  %v214 = vld [vmem:[%s3 + $0x4] sm:$0xf]
  %v215 = vpack.c.bf16 %v212, %v211
  %v216 = vld [vmem:[%s4] sm:$0xff]
  %v217 = vld [vmem:[%s4 + $0x8] sm:$0xff]
  %219 = vset.pattern.permute.xlu0 0
  %220 = vperm.xlu0 %219, %v216
  %v221 = vpop.permute.xlu0 %220
  %224 = vset.pattern.permute.xlu0 0
  %225 = vperm.xlu0 %224, %v217
  %v226 = vpop.permute.xlu0 %225
  %v230 = vunpack.c.l.b16 %v213
  %v231 = vunpack.c.l.b16 %v214
  %v232 = vpack.c.b16 %v231, %v230
  %vm233 = vcmask 130048
  %v235 = vsel %vm233, %v232, 0
  %237 = vmatprep.subr.bf16.mxu0 0
  %238 = vmatpush1.bf16.msra.mxu0 0
  %239 = vmatprep.subr.bf16.mxu0 0
  %240 = vmatpush1.bf16.msra.mxu0 0
  %241 = vmatprep.subr.bf16.mxu0 0
  %242 = vmatpush1.bf16.msra.mxu0 0
  %243 = vmatprep.subr.bf16.mxu0 0
  %244 = vmatpush1.bf16.msra.mxu0 0
  %245 = vmatprep.subr.bf16.mxu0 0
  %246 = vmatpush1.bf16.msra.mxu0 0
  %247 = vmatprep.subr.bf16.mxu0 0
  %248 = vmatpush1.bf16.msra.mxu0 0
  %249 = vmatprep.subr.bf16.mxu0 0
  %250 = vmatpush1.bf16.msra.mxu0 0
  %251 = vmatprep.subr.bf16.mxu0 0
  %252 = vmatpush1.bf16.msra.mxu0 %v215
  %253 = vmatprep.subr.bf16.mxu0 0
  %254 = vmatpush2.bf16.msra.mxu0 0
  %255 = vmatprep.subr.bf16.mxu0 0
  %256 = vmatpush2.bf16.msra.mxu0 0
  %257 = vmatprep.subr.bf16.mxu0 0
  %258 = vmatpush2.bf16.msra.mxu0 0
  %259 = vmatprep.subr.bf16.mxu0 0
  %260 = vmatpush2.bf16.msra.mxu0 0
  %261 = vmatprep.subr.bf16.mxu0 0
  %262 = vmatpush2.bf16.msra.mxu0 0
  %263 = vmatprep.subr.bf16.mxu0 0
  %264 = vmatpush2.bf16.msra.mxu0 0
  %265 = vmatprep.subr.bf16.mxu0 0
  %266 = vmatpush2.bf16.msra.mxu0 0
  %267 = vmatprep.subr.bf16.mxu0 0
  %268 = vmatpush2.bf16.msra.mxu0 0
  %269 = vmatprep.mubr.bf16.mxu0 0
  %270 = vmatmul.mubr.bf16.gmra.mxu0 %v235
  %v271 = vpop.f32.mrf.mxu0
  %v272 = vadd.f32 %v221, %v271
  %v273 = vpop.f32.mrf.mxu0
  %v274 = vpop.f32.mrf.mxu0
  %v275 = vadd.f32 %v226, %v274
  %v276 = vpop.f32.mrf.mxu0
  %277 = vdwg.mxu0
  %278 = vst [vmem:[%s5] sm:$0xff] %v272
  %279 = vst [vmem:[%s5 + $0x8] sm:$0xff] %v275
  // Predicated region
  $region22: #{mobilenet100_forward.6} parent=0 // pred_check
    _
  $region23: #{mobilenet100_forward.6} parent=0 // pred_check_branch
    %281 = sbr.rel (0) target = $region25
  $region24: #{mobilenet100_forward.6} parent=0 // pred_region
    _
  $region25: #{mobilenet100_forward.6} parent=0 // pred_fallthru
    _
  // Predicated region
  $region26: #{mobilenet100_forward.6} parent=0 // pred_check
    _
  $region27: #{mobilenet100_forward.6} parent=0 // pred_check_branch
    %283 = sbr.rel (0) target = $region29
  $region28: #{mobilenet100_forward.6} parent=0 // pred_region
    _
  $region29: #{mobilenet100_forward.6} parent=0 // pred_fallthru
    _

// kernel: mobilenet100_forward.7
$region0: #{mobilenet100_forward.7}
  #allocation0 [shape = 'u32[]', space=smem, size = 0x4, offset = 0x4, fixed_abs, tag = 'smem constant byte address 0x4 - core index']
  #allocation1 [shape = 'u32[144,128]{1,0:T(1,128)}', space=vmem, size = 0x12000, scoped, tag = 'internal scratch']
  %s0 = inlined_call_operand.vmem [shape: f32[8,256], index: 0, kind: input, shape index: {}]
  %s1 = inlined_call_operand.vmem [shape: f32[64,8], index: 1, kind: input, shape index: {}]
  %s2 = inlined_call_operand.vmem [shape: f32[8,256], index: 2, kind: output, shape index: {0}]
  %s3 = inlined_call_operand.hbm [shape: s32[1,256], index: 3, kind: output, shape index: {1}]
  %s4 = inlined_call_operand.hbm [shape: f32[1,1], index: 4, kind: output, shape index: {2}]
  %5 = xla_tuple %s2, %s3, %s4
  %s6 = sld [smem:[#allocation0]]
  $region34: #{mobilenet100_forward.7} parent=0
    _
  %s8 = ssub.s32 1, %s6
  %s9 = scalar_select 0, %s8, %s6
  $region1: #{mobilenet100_forward.7} parent=0
    #allocation2 [shape = 'u8[1024]{0}', space=vmem, size = 0x400, scoped, tag = 'output window, operand 1, single buffered']
    #allocation3 [shape = 's32[1]{0}', space=sflag, size = 0x4, scoped, tag = 'scoped memory for mobilenet100_forward.7']
    #allocation4 [shape = 'u8[512]{0}', space=vmem, size = 0x400, scoped, tag = 'output window, operand 2, single buffered']
    #allocation5 [shape = 's32[1]{0}', space=sflag, size = 0x4, scoped, tag = 'scoped memory for mobilenet100_forward.7']
    %10 = vsyncpa [#allocation3], 0
    %11 = vsyncpa [#allocation5], 0
    // Predicated region
    $region2: #{mobilenet100_forward.7} parent=1 // pred_check
      _
    $region3: #{mobilenet100_forward.7} parent=1 // pred_check_branch
      %13 = sbr.rel (0) target = $region5
    $region4: #{mobilenet100_forward.7} parent=1 // pred_region
      _
    $region5: #{mobilenet100_forward.7} parent=1 // pred_fallthru
      _
    // Predicated region
    $region6: #{mobilenet100_forward.7} parent=1 // pred_check
      _
    $region7: #{mobilenet100_forward.7} parent=1 // pred_check_branch
      %15 = sbr.rel (0) target = $region9
    $region8: #{mobilenet100_forward.7} parent=1 // pred_region
      _
    $region9: #{mobilenet100_forward.7} parent=1 // pred_fallthru
      _
    %v16 = vld [vmem:[%s0] sm:$0xff]
    %v17 = vld [vmem:[%s0 + $0x8] sm:$0xff]
    %v18 = vld [vmem:[%s1] sm:$0xff]
    %v19 = vld [vmem:[%s1 + $0x8] sm:$0xff]
    %v20 = vld [vmem:[%s1 + $0x10] sm:$0xff]
    %v21 = vld [vmem:[%s1 + $0x18] sm:$0xff]
    %v22 = vld [vmem:[%s1 + $0x20] sm:$0xff]
    %v23 = vld [vmem:[%s1 + $0x28] sm:$0xff]
    %v24 = vld [vmem:[%s1 + $0x30] sm:$0xff]
    %v25 = vld [vmem:[%s1 + $0x38] sm:$0xff]
    %vm26 = vcmask 64512
    %v28 = vsel %vm26, %v18, 0
    %v31 = vsel %vm26, %v19, 0
    %v34 = vsel %vm26, %v20, 0
    %v37 = vsel %vm26, %v21, 0
    %v40 = vsel %vm26, %v22, 0
    %v43 = vsel %vm26, %v23, 0
    %v46 = vsel %vm26, %v24, 0
    %v49 = vsel %vm26, %v25, 0
    %51 = vmatprep.subr.mxu0 0.0
    %52 = vmatpush1.msra.mxu0 0.0
    %53 = vmatprep.subr.mxu0 0.0
    %54 = vmatpush1.msra.mxu0 0.0
    %55 = vmatprep.subr.mxu0 0.0
    %56 = vmatpush1.msra.mxu0 0.0
    %57 = vmatprep.subr.mxu0 0.0
    %58 = vmatpush1.msra.mxu0 0.0
    %59 = vmatprep.subr.mxu0 0.0
    %60 = vmatpush1.msra.mxu0 0.0
    %61 = vmatprep.subr.mxu0 0.0
    %62 = vmatpush1.msra.mxu0 0.0
    %63 = vmatprep.subr.mxu0 0.0
    %64 = vmatpush1.msra.mxu0 0.0
    %65 = vmatprep.subr.mxu0 0.0
    %66 = vmatpush1.msra.mxu0 0.0
    %67 = vmatprep.subr.mxu0 0.0
    %68 = vmatpush1.msra.mxu0 0.0
    %69 = vmatprep.subr.mxu0 0.0
    %70 = vmatpush1.msra.mxu0 0.0
    %71 = vmatprep.subr.mxu0 0.0
    %72 = vmatpush1.msra.mxu0 0.0
    %73 = vmatprep.subr.mxu0 0.0
    %74 = vmatpush1.msra.mxu0 0.0
    %75 = vmatprep.subr.mxu0 0.0
    %76 = vmatpush1.msra.mxu0 0.0
    %77 = vmatprep.subr.mxu0 0.0
    %78 = vmatpush1.msra.mxu0 0.0
    %79 = vmatprep.subr.mxu0 0.0
    %80 = vmatpush1.msra.mxu0 0.0
    %81 = vmatprep.subr.mxu0 %v17
    %82 = vmatpush1.msra.mxu0 %v16
    %83 = vmatprep.subr.mxu0 0.0
    %84 = vmatpush2.msra.mxu0 0.0
    %85 = vmatprep.subr.mxu0 0.0
    %86 = vmatpush2.msra.mxu0 0.0
    %87 = vmatprep.subr.mxu0 0.0
    %88 = vmatpush2.msra.mxu0 0.0
    %89 = vmatprep.subr.mxu0 0.0
    %90 = vmatpush2.msra.mxu0 0.0
    %91 = vmatprep.subr.mxu0 0.0
    %92 = vmatpush2.msra.mxu0 0.0
    %93 = vmatprep.subr.mxu0 0.0
    %94 = vmatpush2.msra.mxu0 0.0
    %95 = vmatprep.subr.mxu0 0.0
    %96 = vmatpush2.msra.mxu0 0.0
    %97 = vmatprep.subr.mxu0 0.0
    %98 = vmatpush2.msra.mxu0 0.0
    %99 = vmatprep.subr.mxu0 0.0
    %100 = vmatpush2.msra.mxu0 0.0
    %101 = vmatprep.subr.mxu0 0.0
    %102 = vmatpush2.msra.mxu0 0.0
    %103 = vmatprep.subr.mxu0 0.0
    %104 = vmatpush2.msra.mxu0 0.0
    %105 = vmatprep.subr.mxu0 0.0
    %106 = vmatpush2.msra.mxu0 0.0
    %107 = vmatprep.subr.mxu0 0.0
    %108 = vmatpush2.msra.mxu0 0.0
    %109 = vmatprep.subr.mxu0 0.0
    %110 = vmatpush2.msra.mxu0 0.0
    %111 = vmatprep.subr.mxu0 0.0
    %112 = vmatpush2.msra.mxu0 0.0
    %113 = vmatprep.subr.mxu0 0.0
    %114 = vmatpush2.msra.mxu0 0.0
    %115 = vmatprep.mubr.f32.mxu0 0.0
    %116 = vmatmul.mubr.f32.gmra.mxu0 %v28
    %v117 = vpop.f32.mrf.mxu0
    %v118 = vadd.f32 0.0, %v117
    %v119 = vpop.f32.mrf.mxu0
    %v120 = vadd.f32 0.0, %v119
    %121 = vmatprep.mubr.f32.mxu0 0.0
    %122 = vmatmul.mubr.f32.gmra.mxu0 %v31
    %v123 = vpop.f32.mrf.mxu0
    %v124 = vadd.f32 0.0, %v123
    %v125 = vpop.f32.mrf.mxu0
    %v126 = vadd.f32 0.0, %v125
    %127 = vmatprep.mubr.f32.mxu0 0.0
    %128 = vmatmul.mubr.f32.gmra.mxu0 %v34
    %v129 = vpop.f32.mrf.mxu0
    %v130 = vadd.f32 0.0, %v129
    %v131 = vpop.f32.mrf.mxu0
    %v132 = vadd.f32 0.0, %v131
    %133 = vmatprep.mubr.f32.mxu0 0.0
    %134 = vmatmul.mubr.f32.gmra.mxu0 %v37
    %v135 = vpop.f32.mrf.mxu0
    %v136 = vadd.f32 0.0, %v135
    %v137 = vpop.f32.mrf.mxu0
    %v138 = vadd.f32 0.0, %v137
    %139 = vmatprep.mubr.f32.mxu0 0.0
    %140 = vmatmul.mubr.f32.gmra.mxu0 %v40
    %v141 = vpop.f32.mrf.mxu0
    %v142 = vadd.f32 0.0, %v141
    %v143 = vpop.f32.mrf.mxu0
    %v144 = vadd.f32 0.0, %v143
    %145 = vmatprep.mubr.f32.mxu0 0.0
    %146 = vmatmul.mubr.f32.gmra.mxu0 %v43
    %v147 = vpop.f32.mrf.mxu0
    %v148 = vadd.f32 0.0, %v147
    %v149 = vpop.f32.mrf.mxu0
    %v150 = vadd.f32 0.0, %v149
    %151 = vmatprep.mubr.f32.mxu0 0.0
    %152 = vmatmul.mubr.f32.gmra.mxu0 %v46
    %v153 = vpop.f32.mrf.mxu0
    %v154 = vadd.f32 0.0, %v153
    %v155 = vpop.f32.mrf.mxu0
    %v156 = vadd.f32 0.0, %v155
    %157 = vmatprep.mubr.f32.mxu0 0.0
    %158 = vmatmul.mubr.f32.gmra.mxu0 %v49
    %v159 = vpop.f32.mrf.mxu0
    %v160 = vadd.f32 0.0, %v159
    %v161 = vpop.f32.mrf.mxu0
    %v162 = vadd.f32 0.0, %v161
    %163 = vdwg.mxu0
    %v164 = vmul.f32 %v18, %v18
    %v165 = vmul.f32 %v19, %v19
    %v166 = vmul.f32 %v20, %v20
    %v167 = vmul.f32 %v21, %v21
    %v168 = vmul.f32 %v22, %v22
    %v169 = vmul.f32 %v23, %v23
    %v170 = vmul.f32 %v24, %v24
    %v171 = vmul.f32 %v25, %v25
    %v172 = vsel %vm26, %v164, 0.0
    %173 = vadd.xlane.f32.xlu0 %v172
    %v174 = vpop.xlane.xlu0 %173
    %v175 = vsel %vm26, %v165, 0.0
    %176 = vadd.xlane.f32.xlu0 %v175
    %v177 = vpop.xlane.xlu0 %176
    %v178 = vsel %vm26, %v166, 0.0
    %179 = vadd.xlane.f32.xlu0 %v178
    %v180 = vpop.xlane.xlu0 %179
    %v181 = vsel %vm26, %v167, 0.0
    %182 = vadd.xlane.f32.xlu0 %v181
    %v183 = vpop.xlane.xlu0 %182
    %v184 = vsel %vm26, %v168, 0.0
    %185 = vadd.xlane.f32.xlu0 %v184
    %v186 = vpop.xlane.xlu0 %185
    %v187 = vsel %vm26, %v169, 0.0
    %188 = vadd.xlane.f32.xlu0 %v187
    %v189 = vpop.xlane.xlu0 %188
    %v190 = vsel %vm26, %v170, 0.0
    %191 = vadd.xlane.f32.xlu0 %v190
    %v192 = vpop.xlane.xlu0 %191
    %v193 = vsel %vm26, %v171, 0.0
    %194 = vadd.xlane.f32.xlu0 %v193
    %v195 = vpop.xlane.xlu0 %194
    %v196 = vmul.f32 %v118, 2.0
    %v197 = vmul.f32 %v120, 2.0
    %v198 = vmul.f32 %v124, 2.0
    %v199 = vmul.f32 %v126, 2.0
    %v200 = vmul.f32 %v130, 2.0
    %v201 = vmul.f32 %v132, 2.0
    %v202 = vmul.f32 %v136, 2.0
    %v203 = vmul.f32 %v138, 2.0
    %v204 = vmul.f32 %v142, 2.0
    %v205 = vmul.f32 %v144, 2.0
    %v206 = vmul.f32 %v148, 2.0
    %v207 = vmul.f32 %v150, 2.0
    %v208 = vmul.f32 %v154, 2.0
    %v209 = vmul.f32 %v156, 2.0
    %v210 = vmul.f32 %v160, 2.0
    %v211 = vmul.f32 %v162, 2.0
    %v212 = vsub.f32 %v174, %v196
    %v213 = vsub.f32 %v174, %v197
    %v214 = vsub.f32 %v177, %v198
    %v215 = vsub.f32 %v177, %v199
    %v216 = vsub.f32 %v180, %v200
    %v217 = vsub.f32 %v180, %v201
    %v218 = vsub.f32 %v183, %v202
    %v219 = vsub.f32 %v183, %v203
    %v220 = vsub.f32 %v186, %v204
    %v221 = vsub.f32 %v186, %v205
    %v222 = vsub.f32 %v189, %v206
    %v223 = vsub.f32 %v189, %v207
    %v224 = vsub.f32 %v192, %v208
    %v225 = vsub.f32 %v192, %v209
    %v226 = vsub.f32 %v195, %v210
    %v227 = vsub.f32 %v195, %v211
    %v228 = vmin.f32 %v212, %v216
    %v229 = vmin.f32 %v214, %v218
    %v230 = vmin.f32 %v228, %v220
    %v231 = vmin.f32 %v229, %v222
    %v232 = vmin.f32 %v230, %v224
    %v233 = vmin.f32 %v231, %v226
    %v234 = vmin.f32 %v232, %v233
    %v235 = vrot.slane %v234, 4
    %v236 = vmin.f32 %v234, %v235
    %v237 = vrot.slane %v236, 2
    %v238 = vmin.f32 %v236, %v237
    %v239 = vrot.slane %v238, 1
    %v240 = vmin.f32 %v238, %v239
    %v241 = vmin.f32 %v213, %v217
    %v242 = vmin.f32 %v215, %v219
    %v243 = vmin.f32 %v241, %v221
    %v244 = vmin.f32 %v242, %v223
    %v245 = vmin.f32 %v243, %v225
    %v246 = vmin.f32 %v244, %v227
    %v247 = vmin.f32 %v245, %v246
    %v248 = vrot.slane %v247, 4
    %v249 = vmin.f32 %v247, %v248
    %v250 = vrot.slane %v249, 2
    %v251 = vmin.f32 %v249, %v250
    %v252 = vrot.slane %v251, 1
    %v253 = vmin.f32 %v251, %v252
    %v254 = vlaneseq
    %v255 = vshrl.u32 %v254, 7
    %v256 = vadd.s32 %v255, 8
    %v257 = vadd.s32 %v255, 16
    %v258 = vadd.s32 %v255, 24
    %v259 = vadd.s32 %v255, 32
    %v260 = vadd.s32 %v255, 40
    %v261 = vadd.s32 %v255, 48
    %v262 = vadd.s32 %v255, 56
    %vm263 = vcmp.le.f32.partialorder %v212, %v240
    %vm264 = vcmp.le.f32.partialorder %v213, %v253
    %vm265 = vcmp.le.f32.partialorder %v214, %v240
    %vm266 = vcmp.le.f32.partialorder %v215, %v253
    %vm267 = vcmp.le.f32.partialorder %v216, %v240
    %vm268 = vcmp.le.f32.partialorder %v217, %v253
    %vm269 = vcmp.le.f32.partialorder %v218, %v240
    %vm270 = vcmp.le.f32.partialorder %v219, %v253
    %vm271 = vcmp.le.f32.partialorder %v220, %v240
    %vm272 = vcmp.le.f32.partialorder %v221, %v253
    %vm273 = vcmp.le.f32.partialorder %v222, %v240
    %vm274 = vcmp.le.f32.partialorder %v223, %v253
    %vm275 = vcmp.le.f32.partialorder %v224, %v240
    %vm276 = vcmp.le.f32.partialorder %v225, %v253
    %vm277 = vcmp.le.f32.partialorder %v226, %v240
    %vm278 = vcmp.le.f32.partialorder %v227, %v253
    %v279 = vsel %vm263, %v255, 64
    %v280 = vsel %vm264, %v255, 64
    %v281 = vsel %vm265, %v256, 64
    %v282 = vsel %vm266, %v256, 64
    %v283 = vsel %vm267, %v257, 64
    %v284 = vsel %vm268, %v257, 64
    %v285 = vsel %vm269, %v258, 64
    %v286 = vsel %vm270, %v258, 64
    %v287 = vsel %vm271, %v259, 64
    %v288 = vsel %vm272, %v259, 64
    %v289 = vsel %vm273, %v260, 64
    %v290 = vsel %vm274, %v260, 64
    %v291 = vsel %vm275, %v261, 64
    %v292 = vsel %vm276, %v261, 64
    %v293 = vsel %vm277, %v262, 64
    %v294 = vsel %vm278, %v262, 64
    %vm295 = vcmp.lt.s32.totalorder %v279, %v283
    %v296 = vsel %vm295, %v279, %v283
    %vm297 = vcmp.lt.s32.totalorder %v281, %v285
    %v298 = vsel %vm297, %v281, %v285
    %vm299 = vcmp.lt.s32.totalorder %v296, %v287
    %v300 = vsel %vm299, %v296, %v287
    %vm301 = vcmp.lt.s32.totalorder %v298, %v289
    %v302 = vsel %vm301, %v298, %v289
    %vm303 = vcmp.lt.s32.totalorder %v300, %v291
    %v304 = vsel %vm303, %v300, %v291
    %vm305 = vcmp.lt.s32.totalorder %v302, %v293
    %v306 = vsel %vm305, %v302, %v293
    %vm307 = vcmp.lt.s32.totalorder %v304, %v306
    %v308 = vsel %vm307, %v304, %v306
    %v309 = vrot.slane %v308, 4
    %vm310 = vcmp.lt.s32.totalorder %v308, %v309
    %v311 = vsel %vm310, %v308, %v309
    %v312 = vrot.slane %v311, 2
    %vm313 = vcmp.lt.s32.totalorder %v311, %v312
    %v314 = vsel %vm313, %v311, %v312
    %v315 = vrot.slane %v314, 1
    %vm316 = vcmp.lt.s32.totalorder %v314, %v315
    %v317 = vsel %vm316, %v314, %v315
    %vm318 = vcmp.lt.s32.totalorder %v280, %v284
    %v319 = vsel %vm318, %v280, %v284
    %vm320 = vcmp.lt.s32.totalorder %v282, %v286
    %v321 = vsel %vm320, %v282, %v286
    %vm322 = vcmp.lt.s32.totalorder %v319, %v288
    %v323 = vsel %vm322, %v319, %v288
    %vm324 = vcmp.lt.s32.totalorder %v321, %v290
    %v325 = vsel %vm324, %v321, %v290
    %vm326 = vcmp.lt.s32.totalorder %v323, %v292
    %v327 = vsel %vm326, %v323, %v292
    %vm328 = vcmp.lt.s32.totalorder %v325, %v294
    %v329 = vsel %vm328, %v325, %v294
    %vm330 = vcmp.lt.s32.totalorder %v327, %v329
    %v331 = vsel %vm330, %v327, %v329
    %v332 = vrot.slane %v331, 4
    %vm333 = vcmp.lt.s32.totalorder %v331, %v332
    %v334 = vsel %vm333, %v331, %v332
    %v335 = vrot.slane %v334, 2
    %vm336 = vcmp.lt.s32.totalorder %v334, %v335
    %v337 = vsel %vm336, %v334, %v335
    %v338 = vrot.slane %v337, 1
    %vm339 = vcmp.lt.s32.totalorder %v337, %v338
    %v340 = vsel %vm339, %v337, %v338
    %v341 = vcombine.low %v317, %v340
    %v343 = vunpack.c.l.s4 1966171168
    %v344 = vunpack.c.0.s8 %v343
    %v345 = vlaneseq
    %v346 = vshrl.u32 %v345, 7
    %v347 = vsub.s32 %v344, %v346
    %v348 = vrot.slane %v341, %v347
    %v350 = vunpack.c.l.s4 1966171168
    %v351 = vunpack.c.0.s8 %v350
    %v352 = vlaneseq
    %v353 = vshrl.u32 %v352, 7
    %v354 = vsub.s32 %v351, %v353
    %v355 = vrot.slane %v348, %v354
    %v356 = vlaneseq
    %vm357 = vcmp.ge.s32.totalorder %v356, 0
    %vm358 = vcmp.lt.s32.totalorder %v356, 256
    %vm359 = vmand %vm357, %vm358
    %360 = vst.msk [vmem:[#allocation2] sm:$0x3] %vm359, %v355
    %vm361 = vcmp.eq.s32.totalorder %v255, %v317
    %vm362 = vcmp.eq.s32.totalorder %v255, %v340
    %vm363 = vcmp.eq.s32.totalorder %v256, %v317
    %vm364 = vcmp.eq.s32.totalorder %v256, %v340
    %vm365 = vcmp.eq.s32.totalorder %v257, %v317
    %vm366 = vcmp.eq.s32.totalorder %v257, %v340
    %vm367 = vcmp.eq.s32.totalorder %v258, %v317
    %vm368 = vcmp.eq.s32.totalorder %v258, %v340
    %vm369 = vcmp.eq.s32.totalorder %v259, %v317
    %vm370 = vcmp.eq.s32.totalorder %v259, %v340
    %vm371 = vcmp.eq.s32.totalorder %v260, %v317
    %vm372 = vcmp.eq.s32.totalorder %v260, %v340
    %vm373 = vcmp.eq.s32.totalorder %v261, %v317
    %vm374 = vcmp.eq.s32.totalorder %v261, %v340
    %vm375 = vcmp.eq.s32.totalorder %v262, %v317
    %vm376 = vcmp.eq.s32.totalorder %v262, %v340
    %v377 = vsel %vm361, 1, 0
    %v378 = vsel %vm362, 1, 0
    %v379 = vsel %vm363, 1, 0
    %v380 = vsel %vm364, 1, 0
    %v381 = vsel %vm365, 1, 0
    %v382 = vsel %vm366, 1, 0
    %v383 = vsel %vm367, 1, 0
    %v384 = vsel %vm368, 1, 0
    %v385 = vsel %vm369, 1, 0
    %v386 = vsel %vm370, 1, 0
    %v387 = vsel %vm371, 1, 0
    %v388 = vsel %vm372, 1, 0
    %v389 = vsel %vm373, 1, 0
    %v390 = vsel %vm374, 1, 0
    %v391 = vsel %vm375, 1, 0
    %v392 = vsel %vm376, 1, 0
    %v393 = vcvt.s32.f32 %v377
    %v394 = vcvt.s32.f32 %v378
    %v395 = vcvt.s32.f32 %v379
    %v396 = vcvt.s32.f32 %v380
    %v397 = vcvt.s32.f32 %v381
    %v398 = vcvt.s32.f32 %v382
    %v399 = vcvt.s32.f32 %v383
    %v400 = vcvt.s32.f32 %v384
    %v401 = vcvt.s32.f32 %v385
    %v402 = vcvt.s32.f32 %v386
    %v403 = vcvt.s32.f32 %v387
    %v404 = vcvt.s32.f32 %v388
    %v405 = vcvt.s32.f32 %v389
    %v406 = vcvt.s32.f32 %v390
    %v407 = vcvt.s32.f32 %v391
    %v408 = vcvt.s32.f32 %v392
    %409 = vxpose.xlu0.b32.start [1/16] %v18, 128
    %410 = vxpose.xlu0.b32.cont [2/16] %v19, 128
    %411 = vxpose.xlu0.b32.cont [3/16] %v20, 128
    %412 = vxpose.xlu0.b32.cont [4/16] %v21, 128
    %413 = vxpose.xlu0.b32.cont [5/16] %v22, 128
    %414 = vxpose.xlu0.b32.cont [6/16] %v23, 128
    %415 = vxpose.xlu0.b32.cont [7/16] %v24, 128
    %416 = vxpose.xlu0.b32.cont [8/16] %v25, 128
    %417 = vxpose.xlu0.b32.cont [9/16] 0.0, 128
    %418 = vxpose.xlu0.b32.cont [10/16] 0.0, 128
    %419 = vxpose.xlu0.b32.cont [11/16] 0.0, 128
    %420 = vxpose.xlu0.b32.cont [12/16] 0.0, 128
    %421 = vxpose.xlu0.b32.cont [13/16] 0.0, 128
    %422 = vxpose.xlu0.b32.cont [14/16] 0.0, 128
    %423 = vxpose.xlu0.b32.cont [15/16] 0.0, 128
    %424 = vxpose.xlu0.b32.end [16/16] 0.0, 128
    %v425 = vpop.trf.xlu0
    %v426 = vpop.trf.xlu0
    %v427 = vpop.trf.xlu0
    %v428 = vpop.trf.xlu0
    %v429 = vpop.trf.xlu0
    %v430 = vpop.trf.xlu0
    %v431 = vpop.trf.xlu0
    %v432 = vpop.trf.xlu0
    %v433 = vpop.trf.xlu0
    %v434 = vpop.trf.xlu0
    %v435 = vpop.trf.xlu0
    %v436 = vpop.trf.xlu0
    %v437 = vpop.trf.xlu0
    %v438 = vpop.trf.xlu0
    %v439 = vpop.trf.xlu0
    %v440 = vpop.trf.xlu0
    %vm441 = vcmask 523264
    %v443 = vsel %vm441, %v425, 0
    %445 = vmatprep.subr.mxu0 0.0
    %446 = vmatpush1.msra.mxu0 0.0
    %447 = vmatprep.subr.mxu0 0.0
    %448 = vmatpush1.msra.mxu0 0.0
    %449 = vmatprep.subr.mxu0 0.0
    %450 = vmatpush1.msra.mxu0 0.0
    %451 = vmatprep.subr.mxu0 0.0
    %452 = vmatpush1.msra.mxu0 0.0
    %453 = vmatprep.subr.mxu0 0.0
    %454 = vmatpush1.msra.mxu0 0.0
    %455 = vmatprep.subr.mxu0 0.0
    %456 = vmatpush1.msra.mxu0 0.0
    %457 = vmatprep.subr.mxu0 0.0
    %458 = vmatpush1.msra.mxu0 0.0
    %459 = vmatprep.subr.mxu0 0.0
    %460 = vmatpush1.msra.mxu0 0.0
    %461 = vmatprep.subr.mxu0 %v408
    %462 = vmatpush1.msra.mxu0 %v407
    %463 = vmatprep.subr.mxu0 %v406
    %464 = vmatpush1.msra.mxu0 %v405
    %465 = vmatprep.subr.mxu0 %v404
    %466 = vmatpush1.msra.mxu0 %v403
    %467 = vmatprep.subr.mxu0 %v402
    %468 = vmatpush1.msra.mxu0 %v401
    %469 = vmatprep.subr.mxu0 %v400
    %470 = vmatpush1.msra.mxu0 %v399
    %471 = vmatprep.subr.mxu0 %v398
    %472 = vmatpush1.msra.mxu0 %v397
    %473 = vmatprep.subr.mxu0 %v396
    %474 = vmatpush1.msra.mxu0 %v395
    %475 = vmatprep.subr.mxu0 %v394
    %476 = vmatpush1.msra.mxu0 %v393
    %477 = vmatprep.subr.mxu0 0.0
    %478 = vmatpush2.msra.mxu0 0.0
    %479 = vmatprep.subr.mxu0 0.0
    %480 = vmatpush2.msra.mxu0 0.0
    %481 = vmatprep.subr.mxu0 0.0
    %482 = vmatpush2.msra.mxu0 0.0
    %483 = vmatprep.subr.mxu0 0.0
    %484 = vmatpush2.msra.mxu0 0.0
    %485 = vmatprep.subr.mxu0 0.0
    %486 = vmatpush2.msra.mxu0 0.0
    %487 = vmatprep.subr.mxu0 0.0
    %488 = vmatpush2.msra.mxu0 0.0
    %489 = vmatprep.subr.mxu0 0.0
    %490 = vmatpush2.msra.mxu0 0.0
    %491 = vmatprep.subr.mxu0 0.0
    %492 = vmatpush2.msra.mxu0 0.0
    %493 = vmatprep.subr.mxu0 0.0
    %494 = vmatpush2.msra.mxu0 0.0
    %495 = vmatprep.subr.mxu0 0.0
    %496 = vmatpush2.msra.mxu0 0.0
    %497 = vmatprep.subr.mxu0 0.0
    %498 = vmatpush2.msra.mxu0 0.0
    %499 = vmatprep.subr.mxu0 0.0
    %500 = vmatpush2.msra.mxu0 0.0
    %501 = vmatprep.subr.mxu0 0.0
    %502 = vmatpush2.msra.mxu0 0.0
    %503 = vmatprep.subr.mxu0 0.0
    %504 = vmatpush2.msra.mxu0 0.0
    %505 = vmatprep.subr.mxu0 0.0
    %506 = vmatpush2.msra.mxu0 0.0
    %507 = vmatprep.subr.mxu0 0.0
    %508 = vmatpush2.msra.mxu0 0.0
    %509 = vmatprep.mubr.f32.mxu0 0.0
    %510 = vmatmul.mubr.f32.gmra.mxu0 %v443
    %v511 = vpop.f32.mrf.mxu0
    %v512 = vadd.f32 0.0, %v511
    %v513 = vpop.f32.mrf.mxu0
    %v514 = vadd.f32 0.0, %v513
    %515 = vdwg.mxu0
    %516 = vst [vmem:[%s2] sm:$0xff] %v512
    %517 = vst [vmem:[%s2 + $0x8] sm:$0xff] %v514
    %v518 = vsub.f32 %v512, %v16
    %v519 = vsub.f32 %v514, %v17
    %v520 = vmul.f32 %v518, %v518
    %v521 = vmul.f32 %v519, %v519
    %v522 = vadd.f32 %v520, %v521
    %523 = vadd.xlane.f32.xlu0 %v522
    %v524 = vpop.xlane.xlu0 %523
    %v525 = vrot.slane %v524, 4
    %v526 = vadd.f32 %v524, %v525
    %v527 = vrot.slane %v526, 2
    %v528 = vadd.f32 %v526, %v527
    %v529 = vrot.slane %v528, 1
    %v530 = vadd.f32 %v528, %v529
    %v531 = vmul.f32 %v530, 0.0009765625
    %vm532 = vcmask 0
    %533 = vst.msk [vmem:[#allocation4] sm:$0x1] %vm532, %v531
    // Predicated region
    $region10: #{mobilenet100_forward.7} parent=1 // pred_check
      _
    $region11: #{mobilenet100_forward.7} parent=1 // pred_check_branch
      %535 = sbr.rel (0) target = $region13
    $region12: #{mobilenet100_forward.7} parent=1 // pred_region
      _
    $region13: #{mobilenet100_forward.7} parent=1 // pred_fallthru
      _
    // Predicated region
    $region14: #{mobilenet100_forward.7} parent=1 // pred_check
      _
    $region15: #{mobilenet100_forward.7} parent=1 // pred_check_branch
      %537 = sbr.rel (0) target = $region17
    $region16: #{mobilenet100_forward.7} parent=1 // pred_region
      %s539 = ssub.s32 32, 32
      %540 = vsyncadd [#allocation3], %s539
      %s542 = sshll.u32 [#allocation2], 4
      %s543 = int_to_ptr.vmem [resolvable:$true] %s542
      %545 = dma.vmem_to_hbm [thread:$0]  %s543, 32, %s3, [#allocation3]
    $region17: #{mobilenet100_forward.7} parent=1 // pred_fallthru
      _
    // Predicated region
    $region18: #{mobilenet100_forward.7} parent=1 // pred_check
      _
    $region19: #{mobilenet100_forward.7} parent=1 // pred_check_branch
      %547 = sbr.rel (0) target = $region21
    $region20: #{mobilenet100_forward.7} parent=1 // pred_region
      %s549 = ssub.s32 16, 16
      %550 = vsyncadd [#allocation5], %s549
      %s552 = sshll.u32 [#allocation4], 4
      %s553 = int_to_ptr.vmem [resolvable:$true] %s552
      %555 = dma.vmem_to_hbm [thread:$0]  %s553, 16, %s4, [#allocation5]
    $region21: #{mobilenet100_forward.7} parent=1 // pred_fallthru
      _
    // Predicated region
    $region22: #{mobilenet100_forward.7} parent=1 // pred_check
      _
    $region23: #{mobilenet100_forward.7} parent=1 // pred_check_branch
      %557 = sbr.rel (0) target = $region25
    $region24: #{mobilenet100_forward.7} parent=1 // pred_region
      _
    $region25: #{mobilenet100_forward.7} parent=1 // pred_fallthru
      _
    // Predicated region
    $region26: #{mobilenet100_forward.7} parent=1 // pred_check
      _
    $region27: #{mobilenet100_forward.7} parent=1 // pred_check_branch
      %559 = sbr.rel (0) target = $region29
    $region28: #{mobilenet100_forward.7} parent=1 // pred_region
      %560 = dma.done [#allocation3], 32
    $region29: #{mobilenet100_forward.7} parent=1 // pred_fallthru
      _
    // Predicated region
    $region30: #{mobilenet100_forward.7} parent=1 // pred_check
      _
    $region31: #{mobilenet100_forward.7} parent=1 // pred_check_branch
      %562 = sbr.rel (0) target = $region33
    $region32: #{mobilenet100_forward.7} parent=1 // pred_region
      %563 = dma.done [#allocation5], 16
    $region33: #{mobilenet100_forward.7} parent=1 // pred_fallthru
      _
    %564 = vsyncpa [#allocation3], 1
    %565 = vsyncpa [#allocation5], 1

// kernel: mobilenet100_forward.8
$region0: #{mobilenet100_forward.8}
  #allocation0 [shape = 'u32[]', space=smem, size = 0x4, offset = 0x4, fixed_abs, tag = 'smem constant byte address 0x4 - core index']
  #allocation1 [shape = 'u32[144,128]{1,0:T(1,128)}', space=vmem, size = 0x12000, scoped, tag = 'internal scratch']
  %s0 = inlined_call_operand.vmem [shape: bf16[144,512], index: 0, kind: input, shape index: {}]
  %s1 = inlined_call_operand.vmem [shape: bf16[16,144], index: 1, kind: input, shape index: {}]
  %s2 = inlined_call_operand.vmem [shape: f32[16,1], index: 2, kind: input, shape index: {}]
  %s3 = inlined_call_operand.vmem [shape: f32[16,512], index: 3, kind: output, shape index: {}]
  %s4 = sld [smem:[#allocation0]]
  $region22: #{mobilenet100_forward.8} parent=0
    _
  %s6 = ssub.s32 1, %s4
  %s7 = scalar_select 0, %s6, %s4
  // Predicated region
  $region2: #{mobilenet100_forward.8} parent=0 // pred_check
    _
  $region3: #{mobilenet100_forward.8} parent=0 // pred_check_branch
    %9 = sbr.rel (0) target = $region5
  $region4: #{mobilenet100_forward.8} parent=0 // pred_region
    _
  $region5: #{mobilenet100_forward.8} parent=0 // pred_fallthru
    _
  // Predicated region
  $region6: #{mobilenet100_forward.8} parent=0 // pred_check
    _
  $region7: #{mobilenet100_forward.8} parent=0 // pred_check_branch
    %11 = sbr.rel (0) target = $region9
  $region8: #{mobilenet100_forward.8} parent=0 // pred_region
    _
  $region9: #{mobilenet100_forward.8} parent=0 // pred_fallthru
    _
  // Predicated region
  $region10: #{mobilenet100_forward.8} parent=0 // pred_check
    _
  $region11: #{mobilenet100_forward.8} parent=0 // pred_check_branch
    %13 = sbr.rel (0) target = $region13
  $region12: #{mobilenet100_forward.8} parent=0 // pred_region
    _
  $region13: #{mobilenet100_forward.8} parent=0 // pred_fallthru
    _
  %v15 = vld [vmem:[%s1] sm:$0xff]
  %v16 = vld [vmem:[%s1 + $0x8] sm:$0xff]
  %v17 = vld [vmem:[%s0] sm:$0xff]
  %v18 = vld [vmem:[%s0 + $0x8] sm:$0xff]
  %v19 = vld [vmem:[%s0 + $0x10] sm:$0xff]
  %v20 = vld [vmem:[%s0 + $0x18] sm:$0xff]
  %v21 = vld [vmem:[%s0 + $0x20] sm:$0xff]
  %v22 = vld [vmem:[%s0 + $0x28] sm:$0xff]
  %v23 = vld [vmem:[%s0 + $0x30] sm:$0xff]
  %v24 = vld [vmem:[%s0 + $0x38] sm:$0xff]
  %v25 = vld [vmem:[%s0 + $0x40] sm:$0xff]
  %v26 = vld [vmem:[%s0 + $0x48] sm:$0xff]
  %v27 = vld [vmem:[%s0 + $0x50] sm:$0xff]
  %v28 = vld [vmem:[%s0 + $0x58] sm:$0xff]
  %v29 = vld [vmem:[%s0 + $0x60] sm:$0xff]
  %v30 = vld [vmem:[%s0 + $0x68] sm:$0xff]
  %v31 = vld [vmem:[%s0 + $0x70] sm:$0xff]
  %v32 = vld [vmem:[%s0 + $0x78] sm:$0xff]
  %v33 = vld [vmem:[%s0 + $0x80] sm:$0xff]
  %v34 = vld [vmem:[%s0 + $0x88] sm:$0xff]
  %v35 = vld [vmem:[%s0 + $0x90] sm:$0xff]
  %v36 = vld [vmem:[%s0 + $0x98] sm:$0xff]
  %v37 = vld [vmem:[%s0 + $0xa0] sm:$0xff]
  %v38 = vld [vmem:[%s0 + $0xa8] sm:$0xff]
  %v39 = vld [vmem:[%s0 + $0xb0] sm:$0xff]
  %v40 = vld [vmem:[%s0 + $0xb8] sm:$0xff]
  %v41 = vld [vmem:[%s0 + $0xc0] sm:$0xff]
  %v42 = vld [vmem:[%s0 + $0xc8] sm:$0xff]
  %v43 = vld [vmem:[%s0 + $0xd0] sm:$0xff]
  %v44 = vld [vmem:[%s0 + $0xd8] sm:$0xff]
  %v45 = vld [vmem:[%s0 + $0xe0] sm:$0xff]
  %v46 = vld [vmem:[%s0 + $0xe8] sm:$0xff]
  %v47 = vld [vmem:[%s0 + $0xf0] sm:$0xff]
  %v48 = vld [vmem:[%s0 + $0xf8] sm:$0xff]
  %v49 = vld [vmem:[%s0 + $0x100] sm:$0xff]
  %v50 = vld [vmem:[%s0 + $0x108] sm:$0xff]
  %v51 = vld [vmem:[%s0 + $0x110] sm:$0xff]
  %v52 = vld [vmem:[%s0 + $0x118] sm:$0xff]
  %v53 = vld [vmem:[%s2] sm:$0xff]
  %v54 = vld [vmem:[%s2 + $0x8] sm:$0xff]
  %56 = vset.pattern.permute.xlu0 0
  %57 = vperm.xlu0 %56, %v53
  %v58 = vpop.permute.xlu0 %57
  %61 = vset.pattern.permute.xlu0 0
  %62 = vperm.xlu0 %61, %v54
  %v63 = vpop.permute.xlu0 %62
  %v67 = vunpack.c.l.b16 %v15
  %v68 = vunpack.c.h.b16 %v15
  %v69 = vunpack.c.l.b16 %v16
  %v70 = vunpack.c.h.b16 %v16
  %v71 = vpack.c.b16 %v69, %v67
  %v72 = vpack.c.b16 %v70, %v68
  %v110 = vunpack.c.l.b16 %v17
  %v111 = vunpack.c.h.b16 %v17
  %v112 = vunpack.c.l.b16 %v18
  %v113 = vunpack.c.h.b16 %v18
  %v114 = vunpack.c.l.b16 %v19
  %v115 = vunpack.c.h.b16 %v19
  %v116 = vunpack.c.l.b16 %v20
  %v117 = vunpack.c.h.b16 %v20
  %v118 = vunpack.c.l.b16 %v21
  %v119 = vunpack.c.h.b16 %v21
  %v120 = vunpack.c.l.b16 %v22
  %v121 = vunpack.c.h.b16 %v22
  %v122 = vunpack.c.l.b16 %v23
  %v123 = vunpack.c.h.b16 %v23
  %v124 = vunpack.c.l.b16 %v24
  %v125 = vunpack.c.h.b16 %v24
  %v126 = vunpack.c.l.b16 %v25
  %v127 = vunpack.c.h.b16 %v25
  %v128 = vunpack.c.l.b16 %v26
  %v129 = vunpack.c.h.b16 %v26
  %v130 = vunpack.c.l.b16 %v27
  %v131 = vunpack.c.h.b16 %v27
  %v132 = vunpack.c.l.b16 %v28
  %v133 = vunpack.c.h.b16 %v28
  %v134 = vunpack.c.l.b16 %v29
  %v135 = vunpack.c.h.b16 %v29
  %v136 = vunpack.c.l.b16 %v30
  %v137 = vunpack.c.h.b16 %v30
  %v138 = vunpack.c.l.b16 %v31
  %v139 = vunpack.c.h.b16 %v31
  %v140 = vunpack.c.l.b16 %v32
  %v141 = vunpack.c.h.b16 %v32
  %v142 = vunpack.c.l.b16 %v33
  %v143 = vunpack.c.h.b16 %v33
  %v144 = vunpack.c.l.b16 %v34
  %v145 = vunpack.c.h.b16 %v34
  %v146 = vunpack.c.l.b16 %v35
  %v147 = vunpack.c.h.b16 %v35
  %v148 = vunpack.c.l.b16 %v36
  %v149 = vunpack.c.h.b16 %v36
  %v150 = vunpack.c.l.b16 %v37
  %v151 = vunpack.c.h.b16 %v37
  %v152 = vunpack.c.l.b16 %v38
  %v153 = vunpack.c.h.b16 %v38
  %v154 = vunpack.c.l.b16 %v39
  %v155 = vunpack.c.h.b16 %v39
  %v156 = vunpack.c.l.b16 %v40
  %v157 = vunpack.c.h.b16 %v40
  %v158 = vunpack.c.l.b16 %v41
  %v159 = vunpack.c.h.b16 %v41
  %v160 = vunpack.c.l.b16 %v42
  %v161 = vunpack.c.h.b16 %v42
  %v162 = vunpack.c.l.b16 %v43
  %v163 = vunpack.c.h.b16 %v43
  %v164 = vunpack.c.l.b16 %v44
  %v165 = vunpack.c.h.b16 %v44
  %v166 = vunpack.c.l.b16 %v45
  %v167 = vunpack.c.h.b16 %v45
  %v168 = vunpack.c.l.b16 %v46
  %v169 = vunpack.c.h.b16 %v46
  %v170 = vunpack.c.l.b16 %v47
  %v171 = vunpack.c.h.b16 %v47
  %v172 = vunpack.c.l.b16 %v48
  %v173 = vunpack.c.h.b16 %v48
  %v174 = vunpack.c.l.b16 %v49
  %v175 = vunpack.c.h.b16 %v49
  %v176 = vunpack.c.l.b16 %v50
  %v177 = vunpack.c.h.b16 %v50
  %v178 = vunpack.c.l.b16 %v51
  %v179 = vunpack.c.h.b16 %v51
  %v180 = vunpack.c.l.b16 %v52
  %v181 = vunpack.c.h.b16 %v52
  %v182 = vpack.c.b16 %v114, %v110
  %v183 = vpack.c.b16 %v115, %v111
  %v184 = vpack.c.b16 %v116, %v112
  %v185 = vpack.c.b16 %v117, %v113
  %v186 = vpack.c.b16 %v122, %v118
  %v187 = vpack.c.b16 %v123, %v119
  %v188 = vpack.c.b16 %v124, %v120
  %v189 = vpack.c.b16 %v125, %v121
  %v190 = vpack.c.b16 %v130, %v126
  %v191 = vpack.c.b16 %v131, %v127
  %v192 = vpack.c.b16 %v132, %v128
  %v193 = vpack.c.b16 %v133, %v129
  %v194 = vpack.c.b16 %v138, %v134
  %v195 = vpack.c.b16 %v139, %v135
  %v196 = vpack.c.b16 %v140, %v136
  %v197 = vpack.c.b16 %v141, %v137
  %v198 = vpack.c.b16 %v146, %v142
  %v199 = vpack.c.b16 %v147, %v143
  %v200 = vpack.c.b16 %v148, %v144
  %v201 = vpack.c.b16 %v149, %v145
  %v202 = vpack.c.b16 %v154, %v150
  %v203 = vpack.c.b16 %v155, %v151
  %v204 = vpack.c.b16 %v156, %v152
  %v205 = vpack.c.b16 %v157, %v153
  %v206 = vpack.c.b16 %v162, %v158
  %v207 = vpack.c.b16 %v163, %v159
  %v208 = vpack.c.b16 %v164, %v160
  %v209 = vpack.c.b16 %v165, %v161
  %v210 = vpack.c.b16 %v170, %v166
  %v211 = vpack.c.b16 %v171, %v167
  %v212 = vpack.c.b16 %v172, %v168
  %v213 = vpack.c.b16 %v173, %v169
  %v214 = vpack.c.b16 %v178, %v174
  %v215 = vpack.c.b16 %v179, %v175
  %v216 = vpack.c.b16 %v180, %v176
  %v217 = vpack.c.b16 %v181, %v177
  %vm254 = vcmask 130048
  %v256 = vsel %vm254, %v72, 0
  %258 = vmatprep.subr.bf16.mxu0 %v211
  %259 = vmatpush1.bf16.msra.mxu0 %v210
  %260 = vmatprep.subr.bf16.mxu0 %v207
  %261 = vmatpush1.bf16.msra.mxu0 %v206
  %262 = vmatprep.subr.bf16.mxu0 %v203
  %263 = vmatpush1.bf16.msra.mxu0 %v202
  %264 = vmatprep.subr.bf16.mxu0 %v199
  %265 = vmatpush1.bf16.msra.mxu0 %v198
  %266 = vmatprep.subr.bf16.mxu0 %v195
  %267 = vmatpush1.bf16.msra.mxu0 %v194
  %268 = vmatprep.subr.bf16.mxu0 %v191
  %269 = vmatpush1.bf16.msra.mxu0 %v190
  %270 = vmatprep.subr.bf16.mxu0 %v187
  %271 = vmatpush1.bf16.msra.mxu0 %v186
  %272 = vmatprep.subr.bf16.mxu0 %v183
  %273 = vmatpush1.bf16.msra.mxu0 %v182
  %274 = vmatprep.subr.bf16.mxu0 0
  %275 = vmatpush2.bf16.msra.mxu0 0
  %276 = vmatprep.subr.bf16.mxu0 0
  %277 = vmatpush2.bf16.msra.mxu0 0
  %278 = vmatprep.subr.bf16.mxu0 0
  %279 = vmatpush2.bf16.msra.mxu0 0
  %280 = vmatprep.subr.bf16.mxu0 0
  %281 = vmatpush2.bf16.msra.mxu0 0
  %282 = vmatprep.subr.bf16.mxu0 0
  %283 = vmatpush2.bf16.msra.mxu0 0
  %284 = vmatprep.subr.bf16.mxu0 0
  %285 = vmatpush2.bf16.msra.mxu0 0
  %286 = vmatprep.subr.bf16.mxu0 0
  %287 = vmatpush2.bf16.msra.mxu0 0
  %288 = vmatprep.subr.bf16.mxu0 %v215
  %289 = vmatpush2.bf16.msra.mxu0 %v214
  %290 = vmatprep.mubr.bf16.mxu0 %v256
  %291 = vmatmul.mubr.bf16.gmra.mxu0 %v71
  %v292 = vpop.f32.mrf.mxu0
  %v293 = vadd.f32 %v58, %v292
  %v294 = vpop.f32.mrf.mxu0
  %v295 = vadd.f32 %v58, %v294
  %v296 = vpop.f32.mrf.mxu0
  %v297 = vadd.f32 %v63, %v296
  %v298 = vpop.f32.mrf.mxu0
  %v299 = vadd.f32 %v63, %v298
  %300 = vdwg.mxu0
  %301 = vmatprep.subr.bf16.mxu0 %v213
  %302 = vmatpush1.bf16.msra.mxu0 %v212
  %303 = vmatprep.subr.bf16.mxu0 %v209
  %304 = vmatpush1.bf16.msra.mxu0 %v208
  %305 = vmatprep.subr.bf16.mxu0 %v205
  %306 = vmatpush1.bf16.msra.mxu0 %v204
  %307 = vmatprep.subr.bf16.mxu0 %v201
  %308 = vmatpush1.bf16.msra.mxu0 %v200
  %309 = vmatprep.subr.bf16.mxu0 %v197
  %310 = vmatpush1.bf16.msra.mxu0 %v196
  %311 = vmatprep.subr.bf16.mxu0 %v193
  %312 = vmatpush1.bf16.msra.mxu0 %v192
  %313 = vmatprep.subr.bf16.mxu0 %v189
  %314 = vmatpush1.bf16.msra.mxu0 %v188
  %315 = vmatprep.subr.bf16.mxu0 %v185
  %316 = vmatpush1.bf16.msra.mxu0 %v184
  %317 = vmatprep.subr.bf16.mxu0 0
  %318 = vmatpush2.bf16.msra.mxu0 0
  %319 = vmatprep.subr.bf16.mxu0 0
  %320 = vmatpush2.bf16.msra.mxu0 0
  %321 = vmatprep.subr.bf16.mxu0 0
  %322 = vmatpush2.bf16.msra.mxu0 0
  %323 = vmatprep.subr.bf16.mxu0 0
  %324 = vmatpush2.bf16.msra.mxu0 0
  %325 = vmatprep.subr.bf16.mxu0 0
  %326 = vmatpush2.bf16.msra.mxu0 0
  %327 = vmatprep.subr.bf16.mxu0 0
  %328 = vmatpush2.bf16.msra.mxu0 0
  %329 = vmatprep.subr.bf16.mxu0 0
  %330 = vmatpush2.bf16.msra.mxu0 0
  %331 = vmatprep.subr.bf16.mxu0 %v217
  %332 = vmatpush2.bf16.msra.mxu0 %v216
  %333 = vmatprep.mubr.bf16.mxu0 %v256
  %334 = vmatmul.mubr.bf16.gmra.mxu0 %v71
  %v335 = vpop.f32.mrf.mxu0
  %v336 = vadd.f32 %v58, %v335
  %v337 = vpop.f32.mrf.mxu0
  %v338 = vadd.f32 %v58, %v337
  %v339 = vpop.f32.mrf.mxu0
  %v340 = vadd.f32 %v63, %v339
  %v341 = vpop.f32.mrf.mxu0
  %v342 = vadd.f32 %v63, %v341
  %343 = vdwg.mxu0
  %v344 = vmax.f32 %v293, 0.0
  %v345 = vmax.f32 %v295, 0.0
  %v346 = vmax.f32 %v336, 0.0
  %v347 = vmax.f32 %v338, 0.0
  %v348 = vmax.f32 %v297, 0.0
  %v349 = vmax.f32 %v299, 0.0
  %v350 = vmax.f32 %v340, 0.0
  %v351 = vmax.f32 %v342, 0.0
  %352 = vst [vmem:[%s3] sm:$0xff] %v344
  %353 = vst [vmem:[%s3 + $0x8] sm:$0xff] %v345
  %354 = vst [vmem:[%s3 + $0x10] sm:$0xff] %v346
  %355 = vst [vmem:[%s3 + $0x18] sm:$0xff] %v347
  %356 = vst [vmem:[%s3 + $0x20] sm:$0xff] %v348
  %357 = vst [vmem:[%s3 + $0x28] sm:$0xff] %v349
  %358 = vst [vmem:[%s3 + $0x30] sm:$0xff] %v350
  %359 = vst [vmem:[%s3 + $0x38] sm:$0xff] %v351
  // Predicated region
  $region14: #{mobilenet100_forward.8} parent=0 // pred_check
    _
  $region15: #{mobilenet100_forward.8} parent=0 // pred_check_branch
    %361 = sbr.rel (0) target = $region17
  $region16: #{mobilenet100_forward.8} parent=0 // pred_region
    _
  $region17: #{mobilenet100_forward.8} parent=0 // pred_fallthru
    _
  // Predicated region
  $region18: #{mobilenet100_forward.8} parent=0 // pred_check
    _
  $region19: #{mobilenet100_forward.8} parent=0 // pred_check_branch
    %363 = sbr.rel (0) target = $region21
  $region20: #{mobilenet100_forward.8} parent=0 // pred_region
    _
  $region21: #{mobilenet100_forward.8} parent=0 // pred_fallthru
    _

// kernel: mobilenet100_forward.9
$region0: #{mobilenet100_forward.9}
  #allocation0 [shape = 'u32[]', space=smem, size = 0x4, offset = 0x4, fixed_abs, tag = 'smem constant byte address 0x4 - core index']
  #allocation1 [shape = 'u32[144,128]{1,0:T(1,128)}', space=vmem, size = 0x12000, scoped, tag = 'internal scratch']
  %s0 = inlined_call_operand.vmem [shape: bf16[144,2048], index: 0, kind: input, shape index: {}]
  %s1 = inlined_call_operand.vmem [shape: bf16[3,144], index: 1, kind: input, shape index: {}]
  %s2 = inlined_call_operand.vmem [shape: f32[3,1], index: 2, kind: input, shape index: {}]
  %s3 = inlined_call_operand.vmem [shape: f32[3,2048], index: 3, kind: output, shape index: {}]
  %s4 = sld [smem:[#allocation0]]
  $region68: #{mobilenet100_forward.9} parent=0
    _
  %s6 = ssub.s32 1, %s4
  %s7 = scalar_select 0, %s6, %s4
  $region1: #{mobilenet100_forward.9} parent=0
    #allocation2 [shape = 'u8[294912]{0}', space=vmem, size = 0x48000, scoped, tag = 'input window, operand 0']
    loop: start=0, step=1, limit=6
    $region2: #{mobilenet100_forward.9} parent=1 // loop_pre_header
      _
    $region3: #{mobilenet100_forward.9} parent=1 // loop_header
      %s9 = sphi 0, %s13
      %p10 = scmp.ge.s32.totalorder %s9, 6
      %s19 = sphi 0, %s21
      %s22 = sphi 0, %s19
      %s23 = sphi 0, %s22
      %s39 = sphi 0, %s23
      %s43 = sphi 0, %s43
      %s45 = sphi 0, %s43
      %s46 = sphi 0, %s45
      %s60 = sphi 0, %s46
      %s64 = sphi 0, %s64
      %s66 = sphi 0, %s64
      %s67 = sphi 0, %s66
      %s81 = sphi 0, %s67
      %s87 = sphi 0, %s89
      %s90 = sphi 0, %s87
      %s91 = sphi 0, %s90
      %s107 = sphi 0, %s91
    $region4: #{mobilenet100_forward.9} parent=1 // loop_header_branch
      %12 = sbr.rel (%p10) target = $region8
    $region5: #{mobilenet100_forward.9} parent=1 // loop_body
      %s14 = ssub.s32 %s9, 1
      %s15 = ssub.s32 %s9, 2
      %s16 = sadd.s32 %s9, 1
      %s17 = ssub.s32 %s9, %s16
      %p18 = scmp.eq.s32.totalorder %s17, 0
      %s20 = sadd.s32 %s19, 1
      %s21 = scalar_select %p18, %s19, %s20
      %p24 = pneg %p18
      %p25 = scmp.eq.s32.totalorder %s9, 3
      %p26 = por %p24, %p25
      %p27 = scmp.ne.s32.totalorder %s19, %s22
      %p28 = scmp.eq.s32.totalorder %s9, 0
      %p29 = por %p27, %p28
      %p30 = scmp.ne.s32.totalorder %s19, %s22
      %p31 = scmp.eq.s32.totalorder %s14, 3
      %p32 = por %p30, %p31
      %p33 = scmp.ne.s32.totalorder %s22, %s23
      %p34 = scmp.eq.s32.totalorder %s14, 0
      %p35 = por %p33, %p34
      %p36 = scmp.ne.s32.totalorder %s22, %s23
      %p37 = scmp.eq.s32.totalorder %s15, 3
      %p38 = por %p36, %p37
      %p40 = scmp.ne.s32.totalorder %s23, %s39
      %p41 = scmp.eq.s32.totalorder %s15, 0
      %p42 = por %p40, %p41
      %s44 = sadd.s32 %s43, 1
      %p47 = scmp.eq.s32.totalorder %s9, 3
      %p48 = scmp.ne.s32.totalorder %s43, %s45
      %p49 = scmp.eq.s32.totalorder %s9, 0
      %p50 = por %p48, %p49
      %p51 = scmp.ne.s32.totalorder %s43, %s45
      %p52 = scmp.eq.s32.totalorder %s14, 3
      %p53 = por %p51, %p52
      %p54 = scmp.ne.s32.totalorder %s45, %s46
      %p55 = scmp.eq.s32.totalorder %s14, 0
      %p56 = por %p54, %p55
      %p57 = scmp.ne.s32.totalorder %s45, %s46
      %p58 = scmp.eq.s32.totalorder %s15, 3
      %p59 = por %p57, %p58
      %p61 = scmp.ne.s32.totalorder %s46, %s60
      %p62 = scmp.eq.s32.totalorder %s15, 0
      %p63 = por %p61, %p62
      %s65 = sadd.s32 %s64, 1
      %p68 = scmp.eq.s32.totalorder %s9, 3
      %p69 = scmp.ne.s32.totalorder %s64, %s66
      %p70 = scmp.eq.s32.totalorder %s9, 0
      %p71 = por %p69, %p70
      %p72 = scmp.ne.s32.totalorder %s64, %s66
      %p73 = scmp.eq.s32.totalorder %s14, 3
      %p74 = por %p72, %p73
      %p75 = scmp.ne.s32.totalorder %s66, %s67
      %p76 = scmp.eq.s32.totalorder %s14, 0
      %p77 = por %p75, %p76
      %p78 = scmp.ne.s32.totalorder %s66, %s67
      %p79 = scmp.eq.s32.totalorder %s15, 3
      %p80 = por %p78, %p79
      %p82 = scmp.ne.s32.totalorder %s67, %s81
      %p83 = scmp.eq.s32.totalorder %s15, 0
      %p84 = por %p82, %p83
      %s85 = ssub.s32 %s9, %s16
      %p86 = scmp.eq.s32.totalorder %s85, 0
      %s88 = sadd.s32 %s87, 1
      %s89 = scalar_select %p86, %s87, %s88
      %p92 = pneg %p86
      %p93 = scmp.eq.s32.totalorder %s9, 3
      %p94 = por %p92, %p93
      %p95 = scmp.ne.s32.totalorder %s87, %s90
      %p96 = scmp.eq.s32.totalorder %s9, 0
      %p97 = por %p95, %p96
      %p98 = scmp.ne.s32.totalorder %s87, %s90
      %p99 = scmp.eq.s32.totalorder %s14, 3
      %p100 = por %p98, %p99
      %p101 = scmp.ne.s32.totalorder %s90, %s91
      %p102 = scmp.eq.s32.totalorder %s14, 0
      %p103 = por %p101, %p102
      %p104 = scmp.ne.s32.totalorder %s90, %s91
      %p105 = scmp.eq.s32.totalorder %s15, 3
      %p106 = por %p104, %p105
      %p108 = scmp.ne.s32.totalorder %s91, %s107
      %p109 = scmp.eq.s32.totalorder %s15, 0
      %p110 = por %p108, %p109
      %p111 = scmp.le.s32.totalorder 1, %s9
      %p112 = scmp.lt.s32.totalorder %s9, 5
      %p113 = pnand %p111, %p112
      %p114 = pneg %p113
      // Predicated region
      $region9: #{mobilenet100_forward.9} parent=5 // pred_check
        _
      $region10: #{mobilenet100_forward.9} parent=5 // pred_check_branch
        %116 = sbr.rel (%p113) target = $region12
      $region11: #{mobilenet100_forward.9} parent=5 // pred_region
        %s117 = ssub.s32 %s9, 1
        // Predicated region
        $region13: #{mobilenet100_forward.9} parent=11 // pred_check
          %p118 = pneg %p56
        $region14: #{mobilenet100_forward.9} parent=11 // pred_check_branch
          %120 = sbr.rel (%p118) target = $region16
        $region15: #{mobilenet100_forward.9} parent=11 // pred_region
          _
        $region16: #{mobilenet100_forward.9} parent=11 // pred_fallthru
          _
        // Predicated region
        $region17: #{mobilenet100_forward.9} parent=11 // pred_check
          %p121 = pneg %p77
        $region18: #{mobilenet100_forward.9} parent=11 // pred_check_branch
          %123 = sbr.rel (%p121) target = $region20
        $region19: #{mobilenet100_forward.9} parent=11 // pred_region
          _
        $region20: #{mobilenet100_forward.9} parent=11 // pred_fallthru
          _
      $region12: #{mobilenet100_forward.9} parent=5 // pred_fallthru
        _
      %p124 = scmp.lt.s32.totalorder %s9, 4
      // Predicated region
      $region21: #{mobilenet100_forward.9} parent=5 // pred_check
        %p125 = pneg %p124
      $region22: #{mobilenet100_forward.9} parent=5 // pred_check_branch
        %127 = sbr.rel (%p125) target = $region24
      $region23: #{mobilenet100_forward.9} parent=5 // pred_region
        // Predicated region
        $region25: #{mobilenet100_forward.9} parent=23 // pred_check
          %p128 = pneg %p29
        $region26: #{mobilenet100_forward.9} parent=23 // pred_check_branch
          %130 = sbr.rel (%p128) target = $region28
        $region27: #{mobilenet100_forward.9} parent=23 // pred_region
          %s131 = sand.u32 %s19, 1
          %s132 = sand.u32 %s19, 1
          %s133 = smul.addr %s132, 288
          %s134 = scalar_lea.vmem [#allocation2], %s133
          %s135 = smul.u32 4, %s9
          %s136 = smul.addr %s135, 4
          %s137 = scalar_lea.vmem %s0, %s136
          // Predicated region
          $region29: #{mobilenet100_forward.9} parent=27 // pred_check
            _
          $region30: #{mobilenet100_forward.9} parent=27 // pred_check_branch
            %139 = sbr.rel (0) target = $region32
          $region31: #{mobilenet100_forward.9} parent=27 // pred_region
            // Predicated region
            $region33: #{mobilenet100_forward.9} parent=31 // pred_check
              _
            $region34: #{mobilenet100_forward.9} parent=31 // pred_check_branch
              %141 = sbr.rel (0) target = $region36
            $region35: #{mobilenet100_forward.9} parent=31 // pred_region
              loop: start=0, step=1, limit=1
              $region37: #{mobilenet100_forward.9} parent=35 // loop_pre_header
                _
              $region38: #{mobilenet100_forward.9} parent=35 // loop_header
                %s143 = sphi 0, %s147
                %p144 = scmp.ge.s32.totalorder %s143, 1
                %s148 = sphi %s137, %s137
                %s149 = sphi %s134, %s134
              $region39: #{mobilenet100_forward.9} parent=35 // loop_header_branch
                %146 = sbr.rel (%p144) target = $region43
              $region40: #{mobilenet100_forward.9} parent=35 // loop_body
                %v150 = vld [vmem:[%s148] sm:$0xff]
                %151 = vst [vmem:[%s149] sm:$0xff] %v150
                %v152 = vld [vmem:[%s148 + $0x8] sm:$0xff]
                %153 = vst [vmem:[%s149 + $0x8] sm:$0xff] %v152
                %v154 = vld [vmem:[%s148 + $0x40] sm:$0xff]
                %155 = vst [vmem:[%s149 + $0x10] sm:$0xff] %v154
                %v156 = vld [vmem:[%s148 + $0x48] sm:$0xff]
                %157 = vst [vmem:[%s149 + $0x18] sm:$0xff] %v156
                %v158 = vld [vmem:[%s148 + $0x80] sm:$0xff]
                %159 = vst [vmem:[%s149 + $0x20] sm:$0xff] %v158
                %v160 = vld [vmem:[%s148 + $0x88] sm:$0xff]
                %161 = vst [vmem:[%s149 + $0x28] sm:$0xff] %v160
                %v162 = vld [vmem:[%s148 + $0xc0] sm:$0xff]
                %163 = vst [vmem:[%s149 + $0x30] sm:$0xff] %v162
                %v164 = vld [vmem:[%s148 + $0xc8] sm:$0xff]
                %165 = vst [vmem:[%s149 + $0x38] sm:$0xff] %v164
                %v166 = vld [vmem:[%s148 + $0x100] sm:$0xff]
                %167 = vst [vmem:[%s149 + $0x40] sm:$0xff] %v166
                %v168 = vld [vmem:[%s148 + $0x108] sm:$0xff]
                %169 = vst [vmem:[%s149 + $0x48] sm:$0xff] %v168
                %v170 = vld [vmem:[%s148 + $0x140] sm:$0xff]
                %171 = vst [vmem:[%s149 + $0x50] sm:$0xff] %v170
                %v172 = vld [vmem:[%s148 + $0x148] sm:$0xff]
                %173 = vst [vmem:[%s149 + $0x58] sm:$0xff] %v172
                %v174 = vld [vmem:[%s148 + $0x180] sm:$0xff]
                %175 = vst [vmem:[%s149 + $0x60] sm:$0xff] %v174
                %v176 = vld [vmem:[%s148 + $0x188] sm:$0xff]
                %177 = vst [vmem:[%s149 + $0x68] sm:$0xff] %v176
                %v178 = vld [vmem:[%s148 + $0x1c0] sm:$0xff]
                %179 = vst [vmem:[%s149 + $0x70] sm:$0xff] %v178
                %v180 = vld [vmem:[%s148 + $0x1c8] sm:$0xff]
                %181 = vst [vmem:[%s149 + $0x78] sm:$0xff] %v180
                %v182 = vld [vmem:[%s148 + $0x200] sm:$0xff]
                %183 = vst [vmem:[%s149 + $0x80] sm:$0xff] %v182
                %v184 = vld [vmem:[%s148 + $0x208] sm:$0xff]
                %185 = vst [vmem:[%s149 + $0x88] sm:$0xff] %v184
                %v186 = vld [vmem:[%s148 + $0x240] sm:$0xff]
                %187 = vst [vmem:[%s149 + $0x90] sm:$0xff] %v186
                %v188 = vld [vmem:[%s148 + $0x248] sm:$0xff]
                %189 = vst [vmem:[%s149 + $0x98] sm:$0xff] %v188
                %v190 = vld [vmem:[%s148 + $0x280] sm:$0xff]
                %191 = vst [vmem:[%s149 + $0xa0] sm:$0xff] %v190
                %v192 = vld [vmem:[%s148 + $0x288] sm:$0xff]
                %193 = vst [vmem:[%s149 + $0xa8] sm:$0xff] %v192
                %v194 = vld [vmem:[%s148 + $0x2c0] sm:$0xff]
                %195 = vst [vmem:[%s149 + $0xb0] sm:$0xff] %v194
                %v196 = vld [vmem:[%s148 + $0x2c8] sm:$0xff]
                %197 = vst [vmem:[%s149 + $0xb8] sm:$0xff] %v196
                %v198 = vld [vmem:[%s148 + $0x300] sm:$0xff]
                %199 = vst [vmem:[%s149 + $0xc0] sm:$0xff] %v198
                %v200 = vld [vmem:[%s148 + $0x308] sm:$0xff]
                %201 = vst [vmem:[%s149 + $0xc8] sm:$0xff] %v200
                %v202 = vld [vmem:[%s148 + $0x340] sm:$0xff]
                %203 = vst [vmem:[%s149 + $0xd0] sm:$0xff] %v202
                %v204 = vld [vmem:[%s148 + $0x348] sm:$0xff]
                %205 = vst [vmem:[%s149 + $0xd8] sm:$0xff] %v204
                %v206 = vld [vmem:[%s148 + $0x380] sm:$0xff]
                %207 = vst [vmem:[%s149 + $0xe0] sm:$0xff] %v206
                %v208 = vld [vmem:[%s148 + $0x388] sm:$0xff]
                %209 = vst [vmem:[%s149 + $0xe8] sm:$0xff] %v208
                %v210 = vld [vmem:[%s148 + $0x3c0] sm:$0xff]
                %211 = vst [vmem:[%s149 + $0xf0] sm:$0xff] %v210
                %v212 = vld [vmem:[%s148 + $0x3c8] sm:$0xff]
                %213 = vst [vmem:[%s149 + $0xf8] sm:$0xff] %v212
                %v214 = vld [vmem:[%s148 + $0x400] sm:$0xff]
                %215 = vst [vmem:[%s149 + $0x100] sm:$0xff] %v214
                %v216 = vld [vmem:[%s148 + $0x408] sm:$0xff]
                %217 = vst [vmem:[%s149 + $0x108] sm:$0xff] %v216
                %v218 = vld [vmem:[%s148 + $0x440] sm:$0xff]
                %219 = vst [vmem:[%s149 + $0x110] sm:$0xff] %v218
                %v220 = vld [vmem:[%s148 + $0x448] sm:$0xff]
                %221 = vst [vmem:[%s149 + $0x118] sm:$0xff] %v220
              $region41: #{mobilenet100_forward.9} parent=35 // loop_footer
                %s147 = sadd.s32 1, %s143
              $region42: #{mobilenet100_forward.9} parent=35 // loop_footer_branch
                %142 = sbr.rel target = $region38
              $region43: #{mobilenet100_forward.9} parent=35 // loop_exit
                _
            $region36: #{mobilenet100_forward.9} parent=31 // pred_fallthru
              _
            // Predicated region
            $region44: #{mobilenet100_forward.9} parent=31 // pred_check
              _
            $region45: #{mobilenet100_forward.9} parent=31 // pred_check_branch
              %223 = sbr.rel target = $region47
            $region46: #{mobilenet100_forward.9} parent=31 // pred_region
              _
            $region47: #{mobilenet100_forward.9} parent=31 // pred_fallthru
              _
          $region32: #{mobilenet100_forward.9} parent=27 // pred_fallthru
            _
          %224 = vnop
        $region28: #{mobilenet100_forward.9} parent=23 // pred_fallthru
          _
      $region24: #{mobilenet100_forward.9} parent=5 // pred_fallthru
        _
      %p225 = scmp.le.s32.totalorder 1, %s9
      %p226 = scmp.lt.s32.totalorder %s9, 5
      %p227 = pnand %p225, %p226
      %p228 = pneg %p227
      // Predicated region
      $region48: #{mobilenet100_forward.9} parent=5 // pred_check
        _
      $region49: #{mobilenet100_forward.9} parent=5 // pred_check_branch
        %230 = sbr.rel (%p227) target = $region51
      $region50: #{mobilenet100_forward.9} parent=5 // pred_region
        %s231 = ssub.s32 %s9, 1
        %s232 = sand.u32 %s22, 1
        %s233 = sand.u32 %s22, 1
        %s234 = smul.addr %s233, 288
        %s235 = scalar_lea.vmem [#allocation2], %s234
        // Predicated region
        $region52: #{mobilenet100_forward.9} parent=50 // pred_check
          %p236 = pneg %p35
        $region53: #{mobilenet100_forward.9} parent=50 // pred_check_branch
          %238 = sbr.rel (%p236) target = $region55
        $region54: #{mobilenet100_forward.9} parent=50 // pred_region
          _
        $region55: #{mobilenet100_forward.9} parent=50 // pred_fallthru
          _
        %s239 = sand.u32 %s22, 1
        %s240 = sand.u32 %s22, 1
        %s241 = smul.addr %s240, 288
        %s242 = scalar_lea.vmem [#allocation2], %s241
        %p243 = pneg %p35
        %p244 = pneg %p32
        %p245 = pneg %p56
        %p246 = pneg %p53
        %p247 = pneg %p77
        %p248 = pneg %p74
        %p249 = pneg %p103
        %p250 = pneg %p100
        %s251 = smul.u32 4, %s14
        %p252 = scmp.lt.s32.totalorder %s251, 15
        %s253 = scalar_select %p252, %s251, 15
        %s254 = smul.addr %s253, 4
        %s255 = scalar_lea.vmem %s3, %s254
        %s256 = smul.u32 4, %s14
        %s257 = smul.u32 4, %s14
        %p258 = scmp.lt.s32.totalorder %s257, 15
        %s259 = scalar_select %p258, %s257, 15
        %s260 = smul.addr %s259, 4
        %s261 = scalar_lea.vmem %s3, %s260
        %s262 = smul.u32 4, %s14
        %v264 = vld [vmem:[%s1] sm:$0xf]
        %v265 = vld [vmem:[%s235] sm:$0xff]
        %v266 = vld [vmem:[%s235 + $0x8] sm:$0xff]
        %v267 = vld [vmem:[%s235 + $0x10] sm:$0xff]
        %v268 = vld [vmem:[%s235 + $0x18] sm:$0xff]
        %v269 = vld [vmem:[%s235 + $0x20] sm:$0xff]
        %v270 = vld [vmem:[%s235 + $0x28] sm:$0xff]
        %v271 = vld [vmem:[%s235 + $0x30] sm:$0xff]
        %v272 = vld [vmem:[%s235 + $0x38] sm:$0xff]
        %v273 = vld [vmem:[%s235 + $0x40] sm:$0xff]
        %v274 = vld [vmem:[%s235 + $0x48] sm:$0xff]
        %v275 = vld [vmem:[%s235 + $0x50] sm:$0xff]
        %v276 = vld [vmem:[%s235 + $0x58] sm:$0xff]
        %v277 = vld [vmem:[%s235 + $0x60] sm:$0xff]
        %v278 = vld [vmem:[%s235 + $0x68] sm:$0xff]
        %v279 = vld [vmem:[%s235 + $0x70] sm:$0xff]
        %v280 = vld [vmem:[%s235 + $0x78] sm:$0xff]
        %v281 = vld [vmem:[%s235 + $0x80] sm:$0xff]
        %v282 = vld [vmem:[%s235 + $0x88] sm:$0xff]
        %v283 = vld [vmem:[%s235 + $0x90] sm:$0xff]
        %v284 = vld [vmem:[%s235 + $0x98] sm:$0xff]
        %v285 = vld [vmem:[%s235 + $0xa0] sm:$0xff]
        %v286 = vld [vmem:[%s235 + $0xa8] sm:$0xff]
        %v287 = vld [vmem:[%s235 + $0xb0] sm:$0xff]
        %v288 = vld [vmem:[%s235 + $0xb8] sm:$0xff]
        %v289 = vld [vmem:[%s235 + $0xc0] sm:$0xff]
        %v290 = vld [vmem:[%s235 + $0xc8] sm:$0xff]
        %v291 = vld [vmem:[%s235 + $0xd0] sm:$0xff]
        %v292 = vld [vmem:[%s235 + $0xd8] sm:$0xff]
        %v293 = vld [vmem:[%s235 + $0xe0] sm:$0xff]
        %v294 = vld [vmem:[%s235 + $0xe8] sm:$0xff]
        %v295 = vld [vmem:[%s235 + $0xf0] sm:$0xff]
        %v296 = vld [vmem:[%s235 + $0xf8] sm:$0xff]
        %v297 = vld [vmem:[%s235 + $0x100] sm:$0xff]
        %v298 = vld [vmem:[%s235 + $0x108] sm:$0xff]
        %v299 = vld [vmem:[%s235 + $0x110] sm:$0xff]
        %v300 = vld [vmem:[%s235 + $0x118] sm:$0xff]
        %v301 = vld [vmem:[%s2] sm:$0x7]
        %303 = vset.pattern.permute.xlu0 0
        %304 = vperm.xlu0 %303, %v301
        %v305 = vpop.permute.xlu0 %304
        %v309 = vunpack.c.l.s4 1983009808
        %v310 = vunpack.c.0.s8 %v309
        %v311 = vlaneseq
        %v312 = vshrl.u32 %v311, 7
        %v313 = vsub.s32 %v310, %v312
        %v314 = vrot.slane %v264, %v313
        %v315 = vcombine.high %v314, %v314
        %v353 = vunpack.c.l.b16 %v265
        %v354 = vunpack.c.h.b16 %v265
        %v355 = vunpack.c.l.b16 %v266
        %v356 = vunpack.c.h.b16 %v266
        %v357 = vunpack.c.l.b16 %v267
        %v358 = vunpack.c.h.b16 %v267
        %v359 = vunpack.c.l.b16 %v268
        %v360 = vunpack.c.h.b16 %v268
        %v361 = vunpack.c.l.b16 %v269
        %v362 = vunpack.c.h.b16 %v269
        %v363 = vunpack.c.l.b16 %v270
        %v364 = vunpack.c.h.b16 %v270
        %v365 = vunpack.c.l.b16 %v271
        %v366 = vunpack.c.h.b16 %v271
        %v367 = vunpack.c.l.b16 %v272
        %v368 = vunpack.c.h.b16 %v272
        %v369 = vunpack.c.l.b16 %v273
        %v370 = vunpack.c.h.b16 %v273
        %v371 = vunpack.c.l.b16 %v274
        %v372 = vunpack.c.h.b16 %v274
        %v373 = vunpack.c.l.b16 %v275
        %v374 = vunpack.c.h.b16 %v275
        %v375 = vunpack.c.l.b16 %v276
        %v376 = vunpack.c.h.b16 %v276
        %v377 = vunpack.c.l.b16 %v277
        %v378 = vunpack.c.h.b16 %v277
        %v379 = vunpack.c.l.b16 %v278
        %v380 = vunpack.c.h.b16 %v278
        %v381 = vunpack.c.l.b16 %v279
        %v382 = vunpack.c.h.b16 %v279
        %v383 = vunpack.c.l.b16 %v280
        %v384 = vunpack.c.h.b16 %v280
        %v385 = vunpack.c.l.b16 %v281
        %v386 = vunpack.c.h.b16 %v281
        %v387 = vunpack.c.l.b16 %v282
        %v388 = vunpack.c.h.b16 %v282
        %v389 = vunpack.c.l.b16 %v283
        %v390 = vunpack.c.h.b16 %v283
        %v391 = vunpack.c.l.b16 %v284
        %v392 = vunpack.c.h.b16 %v284
        %v393 = vunpack.c.l.b16 %v285
        %v394 = vunpack.c.h.b16 %v285
        %v395 = vunpack.c.l.b16 %v286
        %v396 = vunpack.c.h.b16 %v286
        %v397 = vunpack.c.l.b16 %v287
        %v398 = vunpack.c.h.b16 %v287
        %v399 = vunpack.c.l.b16 %v288
        %v400 = vunpack.c.h.b16 %v288
        %v401 = vunpack.c.l.b16 %v289
        %v402 = vunpack.c.h.b16 %v289
        %v403 = vunpack.c.l.b16 %v290
        %v404 = vunpack.c.h.b16 %v290
        %v405 = vunpack.c.l.b16 %v291
        %v406 = vunpack.c.h.b16 %v291
        %v407 = vunpack.c.l.b16 %v292
        %v408 = vunpack.c.h.b16 %v292
        %v409 = vunpack.c.l.b16 %v293
        %v410 = vunpack.c.h.b16 %v293
        %v411 = vunpack.c.l.b16 %v294
        %v412 = vunpack.c.h.b16 %v294
        %v413 = vunpack.c.l.b16 %v295
        %v414 = vunpack.c.h.b16 %v295
        %v415 = vunpack.c.l.b16 %v296
        %v416 = vunpack.c.h.b16 %v296
        %v417 = vunpack.c.l.b16 %v297
        %v418 = vunpack.c.h.b16 %v297
        %v419 = vunpack.c.l.b16 %v298
        %v420 = vunpack.c.h.b16 %v298
        %v421 = vunpack.c.l.b16 %v299
        %v422 = vunpack.c.h.b16 %v299
        %v423 = vunpack.c.l.b16 %v300
        %v424 = vunpack.c.h.b16 %v300
        %v425 = vpack.c.b16 %v357, %v353
        %v426 = vpack.c.b16 %v358, %v354
        %v427 = vpack.c.b16 %v359, %v355
        %v428 = vpack.c.b16 %v360, %v356
        %v429 = vpack.c.b16 %v365, %v361
        %v430 = vpack.c.b16 %v366, %v362
        %v431 = vpack.c.b16 %v367, %v363
        %v432 = vpack.c.b16 %v368, %v364
        %v433 = vpack.c.b16 %v373, %v369
        %v434 = vpack.c.b16 %v374, %v370
        %v435 = vpack.c.b16 %v375, %v371
        %v436 = vpack.c.b16 %v376, %v372
        %v437 = vpack.c.b16 %v381, %v377
        %v438 = vpack.c.b16 %v382, %v378
        %v439 = vpack.c.b16 %v383, %v379
        %v440 = vpack.c.b16 %v384, %v380
        %v441 = vpack.c.b16 %v389, %v385
        %v442 = vpack.c.b16 %v390, %v386
        %v443 = vpack.c.b16 %v391, %v387
        %v444 = vpack.c.b16 %v392, %v388
        %v445 = vpack.c.b16 %v397, %v393
        %v446 = vpack.c.b16 %v398, %v394
        %v447 = vpack.c.b16 %v399, %v395
        %v448 = vpack.c.b16 %v400, %v396
        %v449 = vpack.c.b16 %v405, %v401
        %v450 = vpack.c.b16 %v406, %v402
        %v451 = vpack.c.b16 %v407, %v403
        %v452 = vpack.c.b16 %v408, %v404
        %v453 = vpack.c.b16 %v413, %v409
        %v454 = vpack.c.b16 %v414, %v410
        %v455 = vpack.c.b16 %v415, %v411
        %v456 = vpack.c.b16 %v416, %v412
        %v457 = vpack.c.b16 %v421, %v417
        %v458 = vpack.c.b16 %v422, %v418
        %v459 = vpack.c.b16 %v423, %v419
        %v460 = vpack.c.b16 %v424, %v420
        %vm497 = vcmask 130048
        %v499 = vsel %vm497, %v315, 0
        %501 = vmatprep.subr.bf16.mxu0 %v454
        %502 = vmatpush1.bf16.msra.mxu0 %v453
        %503 = vmatprep.subr.bf16.mxu0 %v450
        %504 = vmatpush1.bf16.msra.mxu0 %v449
        %505 = vmatprep.subr.bf16.mxu0 %v446
        %506 = vmatpush1.bf16.msra.mxu0 %v445
        %507 = vmatprep.subr.bf16.mxu0 %v442
        %508 = vmatpush1.bf16.msra.mxu0 %v441
        %509 = vmatprep.subr.bf16.mxu0 %v438
        %510 = vmatpush1.bf16.msra.mxu0 %v437
        %511 = vmatprep.subr.bf16.mxu0 %v434
        %512 = vmatpush1.bf16.msra.mxu0 %v433
        %513 = vmatprep.subr.bf16.mxu0 %v430
        %514 = vmatpush1.bf16.msra.mxu0 %v429
        %515 = vmatprep.subr.bf16.mxu0 %v426
        %516 = vmatpush1.bf16.msra.mxu0 %v425
        %517 = vmatprep.subr.bf16.mxu0 0
        %518 = vmatpush2.bf16.msra.mxu0 0
        %519 = vmatprep.subr.bf16.mxu0 0
        %520 = vmatpush2.bf16.msra.mxu0 0
        %521 = vmatprep.subr.bf16.mxu0 0
        %522 = vmatpush2.bf16.msra.mxu0 0
        %523 = vmatprep.subr.bf16.mxu0 0
        %524 = vmatpush2.bf16.msra.mxu0 0
        %525 = vmatprep.subr.bf16.mxu0 0
        %526 = vmatpush2.bf16.msra.mxu0 0
        %527 = vmatprep.subr.bf16.mxu0 0
        %528 = vmatpush2.bf16.msra.mxu0 0
        %529 = vmatprep.subr.bf16.mxu0 0
        %530 = vmatpush2.bf16.msra.mxu0 0
        %531 = vmatprep.subr.bf16.mxu0 %v458
        %532 = vmatpush2.bf16.msra.mxu0 %v457
        %533 = vmatprep.mubr.bf16.mxu0 %v499
        %534 = vmatmul.mubr.bf16.gmra.mxu0 %v314
        %v535 = vpop.f32.mrf.mxu0
        %v536 = vadd.f32 %v305, %v535
        %v537 = vpop.f32.mrf.mxu0
        %v538 = vadd.f32 %v305, %v537
        %v539 = vpop.f32.mrf.mxu0
        %v540 = vpop.f32.mrf.mxu0
        %541 = vdwg.mxu0
        %542 = vmatprep.subr.bf16.mxu0 %v456
        %543 = vmatpush1.bf16.msra.mxu0 %v455
        %544 = vmatprep.subr.bf16.mxu0 %v452
        %545 = vmatpush1.bf16.msra.mxu0 %v451
        %546 = vmatprep.subr.bf16.mxu0 %v448
        %547 = vmatpush1.bf16.msra.mxu0 %v447
        %548 = vmatprep.subr.bf16.mxu0 %v444
        %549 = vmatpush1.bf16.msra.mxu0 %v443
        %550 = vmatprep.subr.bf16.mxu0 %v440
        %551 = vmatpush1.bf16.msra.mxu0 %v439
        %552 = vmatprep.subr.bf16.mxu0 %v436
        %553 = vmatpush1.bf16.msra.mxu0 %v435
        %554 = vmatprep.subr.bf16.mxu0 %v432
        %555 = vmatpush1.bf16.msra.mxu0 %v431
        %556 = vmatprep.subr.bf16.mxu0 %v428
        %557 = vmatpush1.bf16.msra.mxu0 %v427
        %558 = vmatprep.subr.bf16.mxu0 0
        %559 = vmatpush2.bf16.msra.mxu0 0
        %560 = vmatprep.subr.bf16.mxu0 0
        %561 = vmatpush2.bf16.msra.mxu0 0
        %562 = vmatprep.subr.bf16.mxu0 0
        %563 = vmatpush2.bf16.msra.mxu0 0
        %564 = vmatprep.subr.bf16.mxu0 0
        %565 = vmatpush2.bf16.msra.mxu0 0
        %566 = vmatprep.subr.bf16.mxu0 0
        %567 = vmatpush2.bf16.msra.mxu0 0
        %568 = vmatprep.subr.bf16.mxu0 0
        %569 = vmatpush2.bf16.msra.mxu0 0
        %570 = vmatprep.subr.bf16.mxu0 0
        %571 = vmatpush2.bf16.msra.mxu0 0
        %572 = vmatprep.subr.bf16.mxu0 %v460
        %573 = vmatpush2.bf16.msra.mxu0 %v459
        %574 = vmatprep.mubr.bf16.mxu0 %v499
        %575 = vmatmul.mubr.bf16.gmra.mxu0 %v314
        %v576 = vpop.f32.mrf.mxu0
        %v577 = vadd.f32 %v305, %v576
        %v578 = vpop.f32.mrf.mxu0
        %v579 = vadd.f32 %v305, %v578
        %v580 = vpop.f32.mrf.mxu0
        %v581 = vpop.f32.mrf.mxu0
        %582 = vdwg.mxu0
        %v587 = vcombine.low %v536, %v538
        %v588 = vcombine.low %v577, %v579
        %591 = vst [vmem:[%s261] sm:$0x77] %v587
        %592 = vst [vmem:[%s261 + $0x8] sm:$0x77] %v588
        %s593 = smul.u32 4, %s14
        %p594 = scmp.lt.s32.totalorder %s593, 15
        %s595 = scalar_select %p594, %s593, 15
        %s596 = smul.addr %s595, 4
        %s597 = scalar_lea.vmem %s3, %s596
        // Predicated region
        $region56: #{mobilenet100_forward.9} parent=50 // pred_check
          %p598 = pneg %p100
        $region57: #{mobilenet100_forward.9} parent=50 // pred_check_branch
          %600 = sbr.rel (%p598) target = $region59
        $region58: #{mobilenet100_forward.9} parent=50 // pred_region
          %s601 = smul.u32 4, %s14
        $region59: #{mobilenet100_forward.9} parent=50 // pred_fallthru
          _
      $region51: #{mobilenet100_forward.9} parent=5 // pred_fallthru
        _
      %p602 = scmp.le.s32.totalorder 2, %s9
      // Predicated region
      $region60: #{mobilenet100_forward.9} parent=5 // pred_check
        %p603 = pneg %p602
      $region61: #{mobilenet100_forward.9} parent=5 // pred_check_branch
        %605 = sbr.rel (%p603) target = $region63
      $region62: #{mobilenet100_forward.9} parent=5 // pred_region
        %s606 = ssub.s32 %s9, 2
        // Predicated region
        $region64: #{mobilenet100_forward.9} parent=62 // pred_check
          %p607 = pneg %p106
        $region65: #{mobilenet100_forward.9} parent=62 // pred_check_branch
          %609 = sbr.rel (%p607) target = $region67
        $region66: #{mobilenet100_forward.9} parent=62 // pred_region
          %s610 = smul.u32 4, %s15
          %p611 = scmp.lt.s32.totalorder %s610, 15
          %s612 = scalar_select %p611, %s610, 15
          %s613 = smul.addr %s612, 4
          %s614 = scalar_lea.vmem %s3, %s613
        $region67: #{mobilenet100_forward.9} parent=62 // pred_fallthru
          _
      $region63: #{mobilenet100_forward.9} parent=5 // pred_fallthru
        _
    $region6: #{mobilenet100_forward.9} parent=1 // loop_footer
      %s13 = sadd.s32 1, %s9
    $region7: #{mobilenet100_forward.9} parent=1 // loop_footer_branch
      %8 = sbr.rel target = $region3
    $region8: #{mobilenet100_forward.9} parent=1 // loop_exit
      _

</llo_original>
